<compile_context>
chip_gen: v6e
topology: v6e:2x2x1
jax: 0.10.0
libtpu: 0.0.40
codegen_flags: <defaults>
</compile_context>

<pallas_src>
import functools

import jax
import jax.numpy as jnp
from jax.experimental import pallas as pl
from jax.experimental.pallas import tpu as pltpu

_MIN_NORM = 1e-5
_PROJ_EPS = 1e-3
_DENOM_MIN = 1e-15
_ATANH_CLIP = 1e-5


def _artanh(x):
    x = jnp.clip(x, -1.0 + _ATANH_CLIP, 1.0 - _ATANH_CLIP)
    return 0.5 * (jnp.log1p(x) - jnp.log1p(-x))


# ---------------------------------------------------------------------------
# Pure-JAX reference (naive pmath translation) — used only for the sanity check.
# ---------------------------------------------------------------------------
def _norm_last(x):
    return jnp.sqrt(jnp.sum(x * x, axis=-1, keepdims=True))


def _project_ref(x, c):
    norm = jnp.maximum(_norm_last(x), _MIN_NORM)
    maxnorm = (1.0 - _PROJ_EPS) / jnp.sqrt(c)
    projected = x / norm * maxnorm
    return jnp.where(norm > maxnorm, projected, x)


def _mobius_add_ref(x, y, c):
    x2 = jnp.sum(x * x, axis=-1, keepdims=True)
    y2 = jnp.sum(y * y, axis=-1, keepdims=True)
    xy = jnp.sum(x * y, axis=-1, keepdims=True)
    num = (1.0 + 2.0 * c * xy + c * y2) * x + (1.0 - c * x2) * y
    denom = 1.0 + 2.0 * c * xy + (c * c) * x2 * y2
    return num / jnp.maximum(denom, _DENOM_MIN)


def _expmap0_ref(u, c):
    sqrt_c = jnp.sqrt(c)
    u_norm = jnp.maximum(_norm_last(u), _MIN_NORM)
    return jnp.tanh(sqrt_c * u_norm) * u / (sqrt_c * u_norm)


def _hfusion_math(xh, xe, att, c):
    c = jnp.float32(c)
    one = jnp.float32(1.0)
    e = _project_ref(_expmap0_ref(xe, c), one)
    ma = _mobius_add_ref(-xh, e, one)
    d = 2.0 * _artanh(_norm_last(ma)) * att
    e_norm = jnp.maximum(_norm_last(e), _MIN_NORM)
    s = jnp.tanh(d * _artanh(e_norm)) * e / e_norm
    s = _project_ref(s, c)
    out = _project_ref(_mobius_add_ref(xh, s, one), one)
    return out


# ---------------------------------------------------------------------------
# Pallas kernel (optimized math: per-row reciprocals, deduplicated reductions).
# ---------------------------------------------------------------------------
def _hfusion_kernel(xh_ref, xe_ref, att_ref, out_ref, *, c):
    xh = xh_ref[...].astype(jnp.float32)
    xe = xe_ref[...].astype(jnp.float32)
    att = att_ref[0, 0].astype(jnp.float32)

    c_self = jnp.float32(c)
    sqrt_c = jnp.sqrt(c_self)
    maxnorm1 = jnp.float32(1.0 - _PROJ_EPS)          # project with default c = 1
    maxnorm_c = maxnorm1 / sqrt_c                    # project with c = self.c

    # ---- row reductions reused throughout (lane axis) ----
    xe2 = jnp.sum(xe * xe, axis=-1, keepdims=True)   # (T, 1)
    xh2 = jnp.sum(xh * xh, axis=-1, keepdims=True)   # (T, 1), reused for both mobius_adds

    # ---- e_raw = expmap0(x_e, c=self.c) ----
    xe_norm_raw = jnp.sqrt(xe2)
    xe_norm = jnp.maximum(xe_norm_raw, _MIN_NORM)
    gamma = jnp.tanh(sqrt_c * xe_norm) / (sqrt_c * xe_norm)   # (T,1) divide only
    e_raw = gamma * xe
    e_raw_norm = gamma * xe_norm_raw                 # analytic ||e_raw||

    # ---- e = project(e_raw, c=1.0) ----
    n_e = jnp.maximum(e_raw_norm, _MIN_NORM)
    scale_e = jnp.where(n_e > maxnorm1, maxnorm1 / n_e, 1.0)  # (T,1)
    e = scale_e * e_raw
    e_norm_raw = scale_e * e_raw_norm                # analytic ||e||
    e2 = e_norm_raw * e_norm_raw

    # ---- dist(x_h, e, c=1.0) = 2 * artanh(||(-x_h) (+) e||) ----
    xhe = jnp.sum(xh * e, axis=-1, keepdims=True)
    xy = -xhe                                        # <(-x_h), e>
    num = (1.0 + 2.0 * xy + e2) * (-xh) + (1.0 - xh2) * e
    denom = 1.0 + 2.0 * xy + xh2 * e2
    ma = num * (1.0 / jnp.maximum(denom, _DENOM_MIN))
    ma_norm = jnp.sqrt(jnp.sum(ma * ma, axis=-1, keepdims=True))
    d = 2.0 * _artanh(ma_norm) * att                 # (T, 1)

    # ---- s_pre = mobius_scalar_mul(d, e, c=1.0) ----
    e_norm = jnp.maximum(e_norm_raw, _MIN_NORM)
    factor_s = jnp.tanh(d * _artanh(e_norm)) / e_norm   # (T,1) divide only
    s_pre = factor_s * e
    s_pre_norm = jnp.abs(factor_s) * e_norm_raw      # analytic ||s_pre||

    # ---- s = project(s_pre, c=self.c) ----
    n_s = jnp.maximum(s_pre_norm, _MIN_NORM)
    scale_s = jnp.where(n_s > maxnorm_c, maxnorm_c / n_s, 1.0)
    s = scale_s * s_pre
    s_norm = scale_s * s_pre_norm
    s2 = s_norm * s_norm

    # dropout (inference mode): identity.

    # ---- out = project(mobius_add(x_h, s, c=1.0), c=1.0) ----
    xhs = jnp.sum(xh * s, axis=-1, keepdims=True)
    num2 = (1.0 + 2.0 * xhs + s2) * xh + (1.0 - xh2) * s
    denom2 = 1.0 + 2.0 * xhs + xh2 * s2
    o_pre = num2 * (1.0 / jnp.maximum(denom2, _DENOM_MIN))

    o_norm = jnp.maximum(
        jnp.sqrt(jnp.sum(o_pre * o_pre, axis=-1, keepdims=True)), _MIN_NORM)
    scale_o = jnp.where(o_norm > maxnorm1, maxnorm1 / o_norm, 1.0)
    out_ref[...] = (scale_o * o_pre).astype(out_ref.dtype)


def hfusion_forward(x_h, x_e, att, *, c, drop=0.0, tile_n=512):
    """Pallas HFusion forward. x_h, x_e: [N, D] float, att: [1, 1] float32."""
    n, d = x_h.shape
    assert x_e.shape == (n, d)

    # Lane-dense feature axis (multiple of 128) and sublane-aligned row tiles.
    d_pad = ((d + 127) // 128) * 128
    tile = min(int(tile_n), ((n + 7) // 8) * 8)
    tile = ((tile + 7) // 8) * 8
    n_pad = ((n + tile - 1) // tile) * tile

    if (n_pad, d_pad) != (n, d):
        x_h_p = jnp.pad(x_h, ((0, n_pad - n), (0, d_pad - d)))
        x_e_p = jnp.pad(x_e, ((0, n_pad - n), (0, d_pad - d)))
    else:
        x_h_p, x_e_p = x_h, x_e

    att = jnp.asarray(att, dtype=jnp.float32).reshape(1, 1)

    kernel = functools.partial(_hfusion_kernel, c=float(c))
    out = pl.pallas_call(
        kernel,
        out_shape=jax.ShapeDtypeStruct((n_pad, d_pad), x_h.dtype),
        grid=(n_pad // tile,),
        in_specs=[
            pl.BlockSpec((tile, d_pad), lambda i: (i, 0)),
            pl.BlockSpec((tile, d_pad), lambda i: (i, 0)),
            pl.BlockSpec(memory_space=pltpu.MemorySpace.SMEM),
        ],
        out_specs=pl.BlockSpec((tile, d_pad), lambda i: (i, 0)),
        compiler_params=pltpu.CompilerParams(
            dimension_semantics=("parallel",)),
    )(x_h_p, x_e_p, att)

    return out[:n, :d]


if __name__ == "__main__":
    key = jax.random.PRNGKey(0)
    k1, k2 = jax.random.split(key)

    N, D = 200, 32
    c = 1.0
    drop = 0.0

    # Keep x_h near the Poincare ball; x_e is a Euclidean feature.
    x_h = 0.1 * jax.random.normal(k1, (N, D), dtype=jnp.float32)
    x_e = 0.3 * jax.random.normal(k2, (N, D), dtype=jnp.float32)

    # att = 0 matches reset_parameters(); also test a nonzero value to exercise
    # the full fusion path.  tile_n=128 exercises multi-tile grid + row/lane padding.
    for att_val in (0.0, 0.05):
        att = jnp.full((1, 1), att_val, dtype=jnp.float32)
        out = hfusion_forward(x_h, x_e, att, c=c, drop=drop, tile_n=128)
        out = jax.block_until_ready(out)

        ref = _hfusion_math(x_h, x_e, jnp.float32(att_val), c)
        assert out.shape == (N, D)
        assert bool(jnp.all(jnp.isfinite(out)))
        assert jnp.allclose(out, ref, atol=3e-5, rtol=3e-4), (
            att_val, float(jnp.max(jnp.abs(out - ref))))

    print("KERNEL_OK")
</pallas_src>

<mosaic_0001>
module attributes {stable_mosaic.version = 11 : i64} {
  func.func @_hfusion_kernel(%arg0: i32, %arg1: memref<128x128xf32, #tpu.memory_space<vmem>>, %arg2: memref<128x128xf32, #tpu.memory_space<vmem>>, %arg3: memref<1x1xf32, #tpu.memory_space<smem>>, %arg4: memref<128x128xf32, #tpu.memory_space<vmem>>) attributes {dimension_semantics = [#tpu.dimension_semantics<parallel>], iteration_bounds = array<i64: 2>, scalar_prefetch = 0 : i64, scratch_operands = 0 : i64, tpu.core_type = #tpu.core_type<tc>, window_params = [{transform_indices = @transform_0, window_bounds = array<i64: 128, 128>}, {transform_indices = @transform_1, window_bounds = array<i64: 128, 128>}, {transform_indices = @transform_2, window_bounds = array<i64: 1, 1>}, {transform_indices = @transform_3, window_bounds = array<i64: 128, 128>}]} {
    %c0 = arith.constant 0 : index
    %c0_0 = arith.constant 0 : index
    %0 = vector.load %arg1[%c0, %c0_0] : memref<128x128xf32, #tpu.memory_space<vmem>>, vector<128x128xf32>
    %c0_1 = arith.constant 0 : index
    %c0_2 = arith.constant 0 : index
    %1 = vector.load %arg2[%c0_1, %c0_2] : memref<128x128xf32, #tpu.memory_space<vmem>>, vector<128x128xf32>
    %c0_3 = arith.constant 0 : index
    %c0_4 = arith.constant 0 : index
    %2 = memref.load %arg3[%c0_3, %c0_4] : memref<1x1xf32, #tpu.memory_space<smem>>
    %cst = arith.constant 1.000000e+00 : f32
    %3 = math.sqrt %cst : f32
    %cst_5 = arith.constant 9.990000e-01 : f32
    %4 = arith.divf %cst_5, %3 : f32
    %5 = arith.mulf %1, %1 : vector<128x128xf32>
    %cst_6 = arith.constant dense<0.000000e+00> : vector<128xf32>
    %6 = vector.multi_reduction <add>, %5, %cst_6 [1] : vector<128x128xf32> to vector<128xf32>
    %7 = vector.shape_cast %6 : vector<128xf32> to vector<128x1xf32>
    %8 = arith.mulf %0, %0 : vector<128x128xf32>
    %cst_7 = arith.constant dense<0.000000e+00> : vector<128xf32>
    %9 = vector.multi_reduction <add>, %8, %cst_7 [1] : vector<128x128xf32> to vector<128xf32>
    %10 = vector.shape_cast %9 : vector<128xf32> to vector<128x1xf32>
    %11 = math.sqrt %7 : vector<128x1xf32>
    %cst_8 = arith.constant 9.99999974E-6 : f32
    %12 = vector.broadcast %cst_8 : f32 to vector<128x1xf32>
    %13 = arith.maximumf %11, %12 : vector<128x1xf32>
    %14 = vector.broadcast %3 : f32 to vector<128x1xf32>
    %15 = arith.mulf %14, %13 : vector<128x1xf32>
    %16 = math.tanh %15 : vector<128x1xf32>
    %17 = vector.broadcast %3 : f32 to vector<128x1xf32>
    %18 = arith.mulf %17, %13 : vector<128x1xf32>
    %19 = arith.divf %16, %18 : vector<128x1xf32>
    %20 = vector.broadcast %19 : vector<128x1xf32> to vector<128x128xf32>
    %21 = arith.mulf %20, %1 : vector<128x128xf32>
    %22 = arith.mulf %19, %11 : vector<128x1xf32>
    %cst_9 = arith.constant 9.99999974E-6 : f32
    %23 = vector.broadcast %cst_9 : f32 to vector<128x1xf32>
    %24 = arith.maximumf %22, %23 : vector<128x1xf32>
    %cst_10 = arith.constant 9.990000e-01 : f32
    %25 = vector.broadcast %cst_10 : f32 to vector<128x1xf32>
    %26 = arith.cmpf ogt, %24, %25 : vector<128x1xf32>
    %cst_11 = arith.constant 9.990000e-01 : f32
    %27 = vector.broadcast %cst_11 : f32 to vector<128x1xf32>
    %28 = arith.divf %27, %24 : vector<128x1xf32>
    %cst_12 = arith.constant 1.000000e+00 : f32
    %29 = vector.broadcast %cst_12 : f32 to vector<128x1xf32>
    %30 = arith.select %26, %28, %29 : vector<128x1xi1>, vector<128x1xf32>
    %31 = vector.broadcast %30 : vector<128x1xf32> to vector<128x128xf32>
    %32 = arith.mulf %31, %21 : vector<128x128xf32>
    %33 = arith.mulf %30, %22 : vector<128x1xf32>
    %34 = arith.mulf %33, %33 : vector<128x1xf32>
    %35 = arith.mulf %0, %32 : vector<128x128xf32>
    %cst_13 = arith.constant dense<0.000000e+00> : vector<128xf32>
    %36 = vector.multi_reduction <add>, %35, %cst_13 [1] : vector<128x128xf32> to vector<128xf32>
    %37 = vector.shape_cast %36 : vector<128xf32> to vector<128x1xf32>
    %cst_14 = arith.constant 0.000000e+00 : f32
    %38 = vector.broadcast %cst_14 : f32 to vector<128x1xf32>
    %39 = arith.subf %38, %37 : vector<128x1xf32>
    %cst_15 = arith.constant 2.000000e+00 : f32
    %40 = vector.broadcast %cst_15 : f32 to vector<128x1xf32>
    %41 = arith.mulf %40, %39 : vector<128x1xf32>
    %cst_16 = arith.constant 1.000000e+00 : f32
    %42 = vector.broadcast %cst_16 : f32 to vector<128x1xf32>
    %43 = arith.addf %42, %41 : vector<128x1xf32>
    %44 = arith.addf %43, %34 : vector<128x1xf32>
    %cst_17 = arith.constant 0.000000e+00 : f32
    %45 = vector.broadcast %cst_17 : f32 to vector<128x128xf32>
    %46 = arith.subf %45, %0 : vector<128x128xf32>
    %47 = vector.broadcast %44 : vector<128x1xf32> to vector<128x128xf32>
    %48 = arith.mulf %47, %46 : vector<128x128xf32>
    %cst_18 = arith.constant 1.000000e+00 : f32
    %49 = vector.broadcast %cst_18 : f32 to vector<128x1xf32>
    %50 = arith.subf %49, %10 : vector<128x1xf32>
    %51 = vector.broadcast %50 : vector<128x1xf32> to vector<128x128xf32>
    %52 = arith.mulf %51, %32 : vector<128x128xf32>
    %53 = arith.addf %48, %52 : vector<128x128xf32>
    %cst_19 = arith.constant 2.000000e+00 : f32
    %54 = vector.broadcast %cst_19 : f32 to vector<128x1xf32>
    %55 = arith.mulf %54, %39 : vector<128x1xf32>
    %cst_20 = arith.constant 1.000000e+00 : f32
    %56 = vector.broadcast %cst_20 : f32 to vector<128x1xf32>
    %57 = arith.addf %56, %55 : vector<128x1xf32>
    %58 = arith.mulf %10, %34 : vector<128x1xf32>
    %59 = arith.addf %57, %58 : vector<128x1xf32>
    %cst_21 = arith.constant 1.000000e-15 : f32
    %60 = vector.broadcast %cst_21 : f32 to vector<128x1xf32>
    %61 = arith.maximumf %59, %60 : vector<128x1xf32>
    %cst_22 = arith.constant 1.000000e+00 : f32
    %62 = vector.broadcast %cst_22 : f32 to vector<128x1xf32>
    %63 = arith.divf %62, %61 : vector<128x1xf32>
    %64 = vector.broadcast %63 : vector<128x1xf32> to vector<128x128xf32>
    %65 = arith.mulf %53, %64 : vector<128x128xf32>
    %66 = arith.mulf %65, %65 : vector<128x128xf32>
    %cst_23 = arith.constant dense<0.000000e+00> : vector<128xf32>
    %67 = vector.multi_reduction <add>, %66, %cst_23 [1] : vector<128x128xf32> to vector<128xf32>
    %68 = vector.shape_cast %67 : vector<128xf32> to vector<128x1xf32>
    %69 = math.sqrt %68 : vector<128x1xf32>
    %cst_24 = arith.constant -0.999989986 : f32
    %cst_25 = arith.constant 0.999989986 : f32
    %70 = vector.broadcast %cst_24 : f32 to vector<128x1xf32>
    %71 = arith.maximumf %70, %69 : vector<128x1xf32>
    %72 = vector.broadcast %cst_25 : f32 to vector<128x1xf32>
    %73 = arith.minimumf %72, %71 : vector<128x1xf32>
    %74 = math.log1p %73 : vector<128x1xf32>
    %cst_26 = arith.constant 0.000000e+00 : f32
    %75 = vector.broadcast %cst_26 : f32 to vector<128x1xf32>
    %76 = arith.subf %75, %73 : vector<128x1xf32>
    %77 = math.log1p %76 : vector<128x1xf32>
    %78 = arith.subf %74, %77 : vector<128x1xf32>
    %cst_27 = arith.constant 5.000000e-01 : f32
    %79 = vector.broadcast %cst_27 : f32 to vector<128x1xf32>
    %80 = arith.mulf %79, %78 : vector<128x1xf32>
    %cst_28 = arith.constant 2.000000e+00 : f32
    %81 = vector.broadcast %cst_28 : f32 to vector<128x1xf32>
    %82 = arith.mulf %81, %80 : vector<128x1xf32>
    %83 = vector.broadcast %2 : f32 to vector<128x1xf32>
    %84 = arith.mulf %82, %83 : vector<128x1xf32>
    %cst_29 = arith.constant 9.99999974E-6 : f32
    %85 = vector.broadcast %cst_29 : f32 to vector<128x1xf32>
    %86 = arith.maximumf %33, %85 : vector<128x1xf32>
    %cst_30 = arith.constant -0.999989986 : f32
    %cst_31 = arith.constant 0.999989986 : f32
    %87 = vector.broadcast %cst_30 : f32 to vector<128x1xf32>
    %88 = arith.maximumf %87, %86 : vector<128x1xf32>
    %89 = vector.broadcast %cst_31 : f32 to vector<128x1xf32>
    %90 = arith.minimumf %89, %88 : vector<128x1xf32>
    %91 = math.log1p %90 : vector<128x1xf32>
    %cst_32 = arith.constant 0.000000e+00 : f32
    %92 = vector.broadcast %cst_32 : f32 to vector<128x1xf32>
    %93 = arith.subf %92, %90 : vector<128x1xf32>
    %94 = math.log1p %93 : vector<128x1xf32>
    %95 = arith.subf %91, %94 : vector<128x1xf32>
    %cst_33 = arith.constant 5.000000e-01 : f32
    %96 = vector.broadcast %cst_33 : f32 to vector<128x1xf32>
    %97 = arith.mulf %96, %95 : vector<128x1xf32>
    %98 = arith.mulf %84, %97 : vector<128x1xf32>
    %99 = math.tanh %98 : vector<128x1xf32>
    %100 = arith.divf %99, %86 : vector<128x1xf32>
    %101 = vector.broadcast %100 : vector<128x1xf32> to vector<128x128xf32>
    %102 = arith.mulf %101, %32 : vector<128x128xf32>
    %103 = math.absf %100 : vector<128x1xf32>
    %104 = arith.mulf %103, %33 : vector<128x1xf32>
    %cst_34 = arith.constant 9.99999974E-6 : f32
    %105 = vector.broadcast %cst_34 : f32 to vector<128x1xf32>
    %106 = arith.maximumf %104, %105 : vector<128x1xf32>
    %107 = vector.broadcast %4 : f32 to vector<128x1xf32>
    %108 = arith.cmpf ogt, %106, %107 : vector<128x1xf32>
    %109 = vector.broadcast %4 : f32 to vector<128x1xf32>
    %110 = arith.divf %109, %106 : vector<128x1xf32>
    %cst_35 = arith.constant 1.000000e+00 : f32
    %111 = vector.broadcast %cst_35 : f32 to vector<128x1xf32>
    %112 = arith.select %108, %110, %111 : vector<128x1xi1>, vector<128x1xf32>
    %113 = vector.broadcast %112 : vector<128x1xf32> to vector<128x128xf32>
    %114 = arith.mulf %113, %102 : vector<128x128xf32>
    %115 = arith.mulf %112, %104 : vector<128x1xf32>
    %116 = arith.mulf %115, %115 : vector<128x1xf32>
    %117 = arith.mulf %0, %114 : vector<128x128xf32>
    %cst_36 = arith.constant dense<0.000000e+00> : vector<128xf32>
    %118 = vector.multi_reduction <add>, %117, %cst_36 [1] : vector<128x128xf32> to vector<128xf32>
    %119 = vector.shape_cast %118 : vector<128xf32> to vector<128x1xf32>
    %cst_37 = arith.constant 2.000000e+00 : f32
    %120 = vector.broadcast %cst_37 : f32 to vector<128x1xf32>
    %121 = arith.mulf %120, %119 : vector<128x1xf32>
    %cst_38 = arith.constant 1.000000e+00 : f32
    %122 = vector.broadcast %cst_38 : f32 to vector<128x1xf32>
    %123 = arith.addf %122, %121 : vector<128x1xf32>
    %124 = arith.addf %123, %116 : vector<128x1xf32>
    %125 = vector.broadcast %124 : vector<128x1xf32> to vector<128x128xf32>
    %126 = arith.mulf %125, %0 : vector<128x128xf32>
    %cst_39 = arith.constant 1.000000e+00 : f32
    %127 = vector.broadcast %cst_39 : f32 to vector<128x1xf32>
    %128 = arith.subf %127, %10 : vector<128x1xf32>
    %129 = vector.broadcast %128 : vector<128x1xf32> to vector<128x128xf32>
    %130 = arith.mulf %129, %114 : vector<128x128xf32>
    %131 = arith.addf %126, %130 : vector<128x128xf32>
    %cst_40 = arith.constant 2.000000e+00 : f32
    %132 = vector.broadcast %cst_40 : f32 to vector<128x1xf32>
    %133 = arith.mulf %132, %119 : vector<128x1xf32>
    %cst_41 = arith.constant 1.000000e+00 : f32
    %134 = vector.broadcast %cst_41 : f32 to vector<128x1xf32>
    %135 = arith.addf %134, %133 : vector<128x1xf32>
    %136 = arith.mulf %10, %116 : vector<128x1xf32>
    %137 = arith.addf %135, %136 : vector<128x1xf32>
    %cst_42 = arith.constant 1.000000e-15 : f32
    %138 = vector.broadcast %cst_42 : f32 to vector<128x1xf32>
    %139 = arith.maximumf %137, %138 : vector<128x1xf32>
    %cst_43 = arith.constant 1.000000e+00 : f32
    %140 = vector.broadcast %cst_43 : f32 to vector<128x1xf32>
    %141 = arith.divf %140, %139 : vector<128x1xf32>
    %142 = vector.broadcast %141 : vector<128x1xf32> to vector<128x128xf32>
    %143 = arith.mulf %131, %142 : vector<128x128xf32>
    %144 = arith.mulf %143, %143 : vector<128x128xf32>
    %cst_44 = arith.constant dense<0.000000e+00> : vector<128xf32>
    %145 = vector.multi_reduction <add>, %144, %cst_44 [1] : vector<128x128xf32> to vector<128xf32>
    %146 = vector.shape_cast %145 : vector<128xf32> to vector<128x1xf32>
    %147 = math.sqrt %146 : vector<128x1xf32>
    %cst_45 = arith.constant 9.99999974E-6 : f32
    %148 = vector.broadcast %cst_45 : f32 to vector<128x1xf32>
    %149 = arith.maximumf %147, %148 : vector<128x1xf32>
    %cst_46 = arith.constant 9.990000e-01 : f32
    %150 = vector.broadcast %cst_46 : f32 to vector<128x1xf32>
    %151 = arith.cmpf ogt, %149, %150 : vector<128x1xf32>
    %cst_47 = arith.constant 9.990000e-01 : f32
    %152 = vector.broadcast %cst_47 : f32 to vector<128x1xf32>
    %153 = arith.divf %152, %149 : vector<128x1xf32>
    %cst_48 = arith.constant 1.000000e+00 : f32
    %154 = vector.broadcast %cst_48 : f32 to vector<128x1xf32>
    %155 = arith.select %151, %153, %154 : vector<128x1xi1>, vector<128x1xf32>
    %156 = vector.broadcast %155 : vector<128x1xf32> to vector<128x128xf32>
    %157 = arith.mulf %156, %143 : vector<128x128xf32>
    %c0_49 = arith.constant 0 : index
    %c0_50 = arith.constant 0 : index
    %158 = vector.load %arg4[%c0_49, %c0_50] : memref<128x128xf32, #tpu.memory_space<vmem>>, vector<128x128xf32>
    tpu.vector_store %arg4[%c0_49, %c0_50], %157 {strides = array<i32>} : memref<128x128xf32, #tpu.memory_space<vmem>>, vector<128x128xf32>,
    return
  }
  func.func @transform_0(%arg0: i32) -> (i32, i32) {
    %c0_i32 = arith.constant 0 : i32
    %c0_i32_0 = arith.constant 0 : i32
    return %arg0, %c0_i32 : i32, i32
  }
  func.func @transform_1(%arg0: i32) -> (i32, i32) {
    %c0_i32 = arith.constant 0 : i32
    %c0_i32_0 = arith.constant 0 : i32
    return %arg0, %c0_i32 : i32, i32
  }
  func.func @transform_2(%arg0: i32) -> (i32, i32) {
    %c0_i32 = arith.constant 0 : i32
    %c0_i32_0 = arith.constant 0 : i32
    %c0_i32_1 = arith.constant 0 : i32
    return %c0_i32, %c0_i32_0 : i32, i32
  }
  func.func @transform_3(%arg0: i32) -> (i32, i32) {
    %c0_i32 = arith.constant 0 : i32
    %c0_i32_0 = arith.constant 0 : i32
    return %arg0, %c0_i32 : i32, i32
  }
}

</mosaic_0001>

<llo_original>
// kernel: tpu_custom_call.1
$region0: #{tpu_custom_call.1}
  #allocation0 [shape = 'u32[]', space=smem, size = 0x4, offset = 0x4, fixed_abs, tag = 'smem constant byte address 0x4 - core index']
  #allocation1 [shape = 'u32[144,128]{1,0:T(1,128)}', space=vmem, size = 0x12000, scoped, tag = 'internal scratch']
  #allocation2 [shape = 'f32[1,1]{1,0:T(1,128)S(6)}', space=smem, size = 0x200, scoped, tag = 'scoped memory for tpu_custom_call.1']
  %s0 = inlined_call_operand.hbm [shape: f32[256,128], index: 0, kind: input, shape index: {}]
  %s1 = inlined_call_operand.hbm [shape: f32[256,128], index: 1, kind: input, shape index: {}]
  %s2 = inlined_call_operand.<no memory space> [shape: f32[1,1], index: 2, kind: input, shape index: {}]
  %s3 = inlined_call_operand.hbm [shape: f32[256,128], index: 3, kind: output, shape index: {}]
  %s4 = sld [smem:[#allocation0]]
  $region53: #{tpu_custom_call.1} parent=0
    _
  %s6 = ssub.s32 1, %s4
  %s7 = scalar_select 0, %s6, %s4
  %8 = sst [smem:[#allocation2]] %s2
  $region1: #{tpu_custom_call.1} parent=0
    #allocation3 [shape = 'u8[131072]{0}', space=vmem, size = 0x20000, scoped, tag = 'input window, operand 0']
    #allocation4 [shape = 's32[2]{0}', space=sflag, size = 0x8, scoped, tag = 'scoped memory for tpu_custom_call.1']
    #allocation5 [shape = 's32[2]{0}', space=sflag, size = 0x8, scoped, tag = 'scoped memory for tpu_custom_call.1']
    #allocation6 [shape = 'u8[131072]{0}', space=vmem, size = 0x20000, scoped, tag = 'input window, operand 1']
    #allocation7 [shape = 's32[2]{0}', space=sflag, size = 0x8, scoped, tag = 'scoped memory for tpu_custom_call.1']
    #allocation8 [shape = 'u8[131072]{0}', space=vmem, size = 0x20000, scoped, tag = 'output window, operand 0']
    %9 = vsyncpa [#allocation4], 0
    %s10 = scalar_lea.sflag [#allocation4], 1
    %11 = vsyncpa %s10, 0
    %12 = vsyncpa [#allocation7], 0
    %s13 = scalar_lea.sflag [#allocation7], 1
    %14 = vsyncpa %s13, 0
    %15 = vsyncpa [#allocation5], 0
    %s16 = scalar_lea.sflag [#allocation5], 1
    %17 = vsyncpa %s16, 0
    loop: start=0, step=1, limit=4
    $region2: #{tpu_custom_call.1} parent=1 // loop_pre_header
      _
    $region3: #{tpu_custom_call.1} parent=1 // loop_header
      %s19 = sphi 0, %s23
      %p20 = scmp.ge.s32.totalorder %s19, 4
      %s29 = sphi 0, %s31
      %s32 = sphi 0, %s29
      %s33 = sphi 0, %s32
      %s49 = sphi 0, %s33
      %s55 = sphi 0, %s57
      %s58 = sphi 0, %s55
      %s59 = sphi 0, %s58
      %s75 = sphi 0, %s59
      %s79 = sphi 0, %s79
      %s81 = sphi 0, %s79
      %s82 = sphi 0, %s81
      %s96 = sphi 0, %s82
      %s102 = sphi 0, %s104
      %s105 = sphi 0, %s102
      %s106 = sphi 0, %s105
      %s122 = sphi 0, %s106
    $region4: #{tpu_custom_call.1} parent=1 // loop_header_branch
      %22 = sbr.rel (%p20) target = $region8
    $region5: #{tpu_custom_call.1} parent=1 // loop_body
      %s24 = ssub.s32 %s19, 1
      %s25 = ssub.s32 %s19, 2
      %s26 = sadd.s32 %s19, 1
      %s27 = ssub.s32 %s19, %s26
      %p28 = scmp.eq.s32.totalorder %s27, 0
      %s30 = sadd.s32 %s29, 1
      %s31 = scalar_select %p28, %s29, %s30
      %p34 = pneg %p28
      %p35 = scmp.eq.s32.totalorder %s19, 1
      %p36 = por %p34, %p35
      %p37 = scmp.ne.s32.totalorder %s29, %s32
      %p38 = scmp.eq.s32.totalorder %s19, 0
      %p39 = por %p37, %p38
      %p40 = scmp.ne.s32.totalorder %s29, %s32
      %p41 = scmp.eq.s32.totalorder %s24, 1
      %p42 = por %p40, %p41
      %p43 = scmp.ne.s32.totalorder %s32, %s33
      %p44 = scmp.eq.s32.totalorder %s24, 0
      %p45 = por %p43, %p44
      %p46 = scmp.ne.s32.totalorder %s32, %s33
      %p47 = scmp.eq.s32.totalorder %s25, 1
      %p48 = por %p46, %p47
      %p50 = scmp.ne.s32.totalorder %s33, %s49
      %p51 = scmp.eq.s32.totalorder %s25, 0
      %p52 = por %p50, %p51
      %s53 = ssub.s32 %s19, %s26
      %p54 = scmp.eq.s32.totalorder %s53, 0
      %s56 = sadd.s32 %s55, 1
      %s57 = scalar_select %p54, %s55, %s56
      %p60 = pneg %p54
      %p61 = scmp.eq.s32.totalorder %s19, 1
      %p62 = por %p60, %p61
      %p63 = scmp.ne.s32.totalorder %s55, %s58
      %p64 = scmp.eq.s32.totalorder %s19, 0
      %p65 = por %p63, %p64
      %p66 = scmp.ne.s32.totalorder %s55, %s58
      %p67 = scmp.eq.s32.totalorder %s24, 1
      %p68 = por %p66, %p67
      %p69 = scmp.ne.s32.totalorder %s58, %s59
      %p70 = scmp.eq.s32.totalorder %s24, 0
      %p71 = por %p69, %p70
      %p72 = scmp.ne.s32.totalorder %s58, %s59
      %p73 = scmp.eq.s32.totalorder %s25, 1
      %p74 = por %p72, %p73
      %p76 = scmp.ne.s32.totalorder %s59, %s75
      %p77 = scmp.eq.s32.totalorder %s25, 0
      %p78 = por %p76, %p77
      %s80 = sadd.s32 %s79, 1
      %p83 = scmp.eq.s32.totalorder %s19, 1
      %p84 = scmp.ne.s32.totalorder %s79, %s81
      %p85 = scmp.eq.s32.totalorder %s19, 0
      %p86 = por %p84, %p85
      %p87 = scmp.ne.s32.totalorder %s79, %s81
      %p88 = scmp.eq.s32.totalorder %s24, 1
      %p89 = por %p87, %p88
      %p90 = scmp.ne.s32.totalorder %s81, %s82
      %p91 = scmp.eq.s32.totalorder %s24, 0
      %p92 = por %p90, %p91
      %p93 = scmp.ne.s32.totalorder %s81, %s82
      %p94 = scmp.eq.s32.totalorder %s25, 1
      %p95 = por %p93, %p94
      %p97 = scmp.ne.s32.totalorder %s82, %s96
      %p98 = scmp.eq.s32.totalorder %s25, 0
      %p99 = por %p97, %p98
      %s100 = ssub.s32 %s19, %s26
      %p101 = scmp.eq.s32.totalorder %s100, 0
      %s103 = sadd.s32 %s102, 1
      %s104 = scalar_select %p101, %s102, %s103
      %p107 = pneg %p101
      %p108 = scmp.eq.s32.totalorder %s19, 1
      %p109 = por %p107, %p108
      %p110 = scmp.ne.s32.totalorder %s102, %s105
      %p111 = scmp.eq.s32.totalorder %s19, 0
      %p112 = por %p110, %p111
      %p113 = scmp.ne.s32.totalorder %s102, %s105
      %p114 = scmp.eq.s32.totalorder %s24, 1
      %p115 = por %p113, %p114
      %p116 = scmp.ne.s32.totalorder %s105, %s106
      %p117 = scmp.eq.s32.totalorder %s24, 0
      %p118 = por %p116, %p117
      %p119 = scmp.ne.s32.totalorder %s105, %s106
      %p120 = scmp.eq.s32.totalorder %s25, 1
      %p121 = por %p119, %p120
      %p123 = scmp.ne.s32.totalorder %s106, %s122
      %p124 = scmp.eq.s32.totalorder %s25, 0
      %p125 = por %p123, %p124
      %p126 = scmp.le.s32.totalorder 1, %s19
      %p127 = scmp.lt.s32.totalorder %s19, 3
      %p128 = pnand %p126, %p127
      %p129 = pneg %p128
      // Predicated region
      $region9: #{tpu_custom_call.1} parent=5 // pred_check
        _
      $region10: #{tpu_custom_call.1} parent=5 // pred_check_branch
        %131 = sbr.rel (%p128) target = $region12
      $region11: #{tpu_custom_call.1} parent=5 // pred_region
        %s132 = ssub.s32 %s19, 1
        // Predicated region
        $region13: #{tpu_custom_call.1} parent=11 // pred_check
          %p133 = pneg %p92
        $region14: #{tpu_custom_call.1} parent=11 // pred_check_branch
          %135 = sbr.rel (%p133) target = $region16
        $region15: #{tpu_custom_call.1} parent=11 // pred_region
          _
        $region16: #{tpu_custom_call.1} parent=11 // pred_fallthru
          _
      $region12: #{tpu_custom_call.1} parent=5 // pred_fallthru
        _
      %p136 = scmp.lt.s32.totalorder %s19, 2
      // Predicated region
      $region17: #{tpu_custom_call.1} parent=5 // pred_check
        %p137 = pneg %p136
      $region18: #{tpu_custom_call.1} parent=5 // pred_check_branch
        %139 = sbr.rel (%p137) target = $region20
      $region19: #{tpu_custom_call.1} parent=5 // pred_region
        // Predicated region
        $region21: #{tpu_custom_call.1} parent=19 // pred_check
          %p140 = pneg %p39
        $region22: #{tpu_custom_call.1} parent=19 // pred_check_branch
          %142 = sbr.rel (%p140) target = $region24
        $region23: #{tpu_custom_call.1} parent=19 // pred_region
          %s143 = sand.u32 %s29, 1
          %s144 = scalar_lea.sflag [#allocation4], %s143
          %s145 = sand.u32 %s29, 1
          %s146 = smul.addr %s145, 128
          %s147 = scalar_lea.vmem [#allocation3], %s146
          %s148 = smul.u32 16, %s19
          %s150 = ssub.s32 2048, 2048
          %151 = vsyncadd %s144, %s150
          %s152 = smul.addr %s148, 128
          %s153 = scalar_lea.hbm %s0, %s152
          %s154 = sshll.u32 %s147, 4
          %s155 = int_to_ptr.vmem [resolvable:$true] %s154
          %160 = dma.hbm_to_vmem [thread:$0]  %s153, 2048, %s155, %s144, 128, 128, 8
        $region24: #{tpu_custom_call.1} parent=19 // pred_fallthru
          _
        // Predicated region
        $region25: #{tpu_custom_call.1} parent=19 // pred_check
          %p161 = pneg %p65
        $region26: #{tpu_custom_call.1} parent=19 // pred_check_branch
          %163 = sbr.rel (%p161) target = $region28
        $region27: #{tpu_custom_call.1} parent=19 // pred_region
          %s164 = sand.u32 %s55, 1
          %s165 = scalar_lea.sflag [#allocation7], %s164
          %s166 = sand.u32 %s55, 1
          %s167 = smul.addr %s166, 128
          %s168 = scalar_lea.vmem [#allocation6], %s167
          %s169 = smul.u32 16, %s19
          %s171 = ssub.s32 2048, 2048
          %172 = vsyncadd %s165, %s171
          %s173 = smul.addr %s169, 128
          %s174 = scalar_lea.hbm %s1, %s173
          %s175 = sshll.u32 %s168, 4
          %s176 = int_to_ptr.vmem [resolvable:$true] %s175
          %181 = dma.hbm_to_vmem [thread:$0]  %s174, 2048, %s176, %s165, 128, 128, 8
        $region28: #{tpu_custom_call.1} parent=19 // pred_fallthru
          _
      $region20: #{tpu_custom_call.1} parent=5 // pred_fallthru
        _
      %p182 = scmp.le.s32.totalorder 1, %s19
      %p183 = scmp.lt.s32.totalorder %s19, 3
      %p184 = pnand %p182, %p183
      %p185 = pneg %p184
      // Predicated region
      $region29: #{tpu_custom_call.1} parent=5 // pred_check
        _
      $region30: #{tpu_custom_call.1} parent=5 // pred_check_branch
        %187 = sbr.rel (%p184) target = $region32
      $region31: #{tpu_custom_call.1} parent=5 // pred_region
        %s188 = ssub.s32 %s19, 1
        %s189 = sand.u32 %s32, 1
        %s190 = scalar_lea.sflag [#allocation4], %s189
        %s191 = sand.u32 %s32, 1
        %s192 = smul.addr %s191, 128
        %s193 = scalar_lea.vmem [#allocation3], %s192
        // Predicated region
        $region33: #{tpu_custom_call.1} parent=31 // pred_check
          %p194 = pneg %p45
        $region34: #{tpu_custom_call.1} parent=31 // pred_check_branch
          %196 = sbr.rel (%p194) target = $region36
        $region35: #{tpu_custom_call.1} parent=31 // pred_region
          %197 = dma.done %s190, 2048
        $region36: #{tpu_custom_call.1} parent=31 // pred_fallthru
          _
        %s198 = sand.u32 %s58, 1
        %s199 = scalar_lea.sflag [#allocation7], %s198
        %s200 = sand.u32 %s58, 1
        %s201 = smul.addr %s200, 128
        %s202 = scalar_lea.vmem [#allocation6], %s201
        // Predicated region
        $region37: #{tpu_custom_call.1} parent=31 // pred_check
          %p203 = pneg %p71
        $region38: #{tpu_custom_call.1} parent=31 // pred_check_branch
          %205 = sbr.rel (%p203) target = $region40
        $region39: #{tpu_custom_call.1} parent=31 // pred_region
          %206 = dma.done %s199, 2048
        $region40: #{tpu_custom_call.1} parent=31 // pred_fallthru
          _
        %s207 = sand.u32 %s32, 1
        %s208 = scalar_lea.sflag [#allocation4], %s207
        %s209 = sand.u32 %s32, 1
        %s210 = smul.addr %s209, 128
        %s211 = scalar_lea.vmem [#allocation3], %s210
        %p212 = pneg %p45
        %p213 = pneg %p42
        %s214 = sand.u32 %s58, 1
        %s215 = scalar_lea.sflag [#allocation7], %s214
        %s216 = sand.u32 %s58, 1
        %s217 = smul.addr %s216, 128
        %s218 = scalar_lea.vmem [#allocation6], %s217
        %p219 = pneg %p71
        %p220 = pneg %p68
        %p221 = pneg %p92
        %p222 = pneg %p89
        %p223 = pneg %p118
        %p224 = pneg %p115
        %s225 = sand.u32 %s105, 1
        %s226 = scalar_lea.sflag [#allocation5], %s225
        %s227 = sand.u32 %s105, 1
        %s228 = smul.addr %s227, 128
        %s229 = scalar_lea.vmem [#allocation8], %s228
        %s230 = smul.u32 16, %s24
        %s231 = smul.u32 16, %s24
        %s232 = smul.u32 16, %s24
        %v233 = vld [vmem:[%s193] sm:$0xff]
        %v234 = vld [vmem:[%s193 + $0x8] sm:$0xff]
        %v235 = vld [vmem:[%s193 + $0x10] sm:$0xff]
        %v236 = vld [vmem:[%s193 + $0x18] sm:$0xff]
        %v237 = vld [vmem:[%s193 + $0x20] sm:$0xff]
        %v238 = vld [vmem:[%s193 + $0x28] sm:$0xff]
        %v239 = vld [vmem:[%s193 + $0x30] sm:$0xff]
        %v240 = vld [vmem:[%s193 + $0x38] sm:$0xff]
        %v241 = vld [vmem:[%s193 + $0x40] sm:$0xff]
        %v242 = vld [vmem:[%s193 + $0x48] sm:$0xff]
        %v243 = vld [vmem:[%s193 + $0x50] sm:$0xff]
        %v244 = vld [vmem:[%s193 + $0x58] sm:$0xff]
        %v245 = vld [vmem:[%s193 + $0x60] sm:$0xff]
        %v246 = vld [vmem:[%s193 + $0x68] sm:$0xff]
        %v247 = vld [vmem:[%s193 + $0x70] sm:$0xff]
        %v248 = vld [vmem:[%s193 + $0x78] sm:$0xff]
        %v249 = vld [vmem:[%s202] sm:$0xff]
        %v250 = vld [vmem:[%s202 + $0x8] sm:$0xff]
        %v251 = vld [vmem:[%s202 + $0x10] sm:$0xff]
        %v252 = vld [vmem:[%s202 + $0x18] sm:$0xff]
        %v253 = vld [vmem:[%s202 + $0x20] sm:$0xff]
        %v254 = vld [vmem:[%s202 + $0x28] sm:$0xff]
        %v255 = vld [vmem:[%s202 + $0x30] sm:$0xff]
        %v256 = vld [vmem:[%s202 + $0x38] sm:$0xff]
        %v257 = vld [vmem:[%s202 + $0x40] sm:$0xff]
        %v258 = vld [vmem:[%s202 + $0x48] sm:$0xff]
        %v259 = vld [vmem:[%s202 + $0x50] sm:$0xff]
        %v260 = vld [vmem:[%s202 + $0x58] sm:$0xff]
        %v261 = vld [vmem:[%s202 + $0x60] sm:$0xff]
        %v262 = vld [vmem:[%s202 + $0x68] sm:$0xff]
        %v263 = vld [vmem:[%s202 + $0x70] sm:$0xff]
        %v264 = vld [vmem:[%s202 + $0x78] sm:$0xff]
        %s265 = sld [smem:[#allocation2]]
        %v266 = vmul.f32 %v249, %v249
        %v267 = vmul.f32 %v250, %v250
        %v268 = vmul.f32 %v251, %v251
        %v269 = vmul.f32 %v252, %v252
        %v270 = vmul.f32 %v253, %v253
        %v271 = vmul.f32 %v254, %v254
        %v272 = vmul.f32 %v255, %v255
        %v273 = vmul.f32 %v256, %v256
        %v274 = vmul.f32 %v257, %v257
        %v275 = vmul.f32 %v258, %v258
        %v276 = vmul.f32 %v259, %v259
        %v277 = vmul.f32 %v260, %v260
        %v278 = vmul.f32 %v261, %v261
        %v279 = vmul.f32 %v262, %v262
        %v280 = vmul.f32 %v263, %v263
        %v281 = vmul.f32 %v264, %v264
        %282 = vadd.xlane.f32.xlu0 %v266
        %v283 = vpop.xlane.xlu0 %282
        %284 = vadd.xlane.f32.xlu0 %v267
        %v285 = vpop.xlane.xlu0 %284
        %286 = vadd.xlane.f32.xlu0 %v268
        %v287 = vpop.xlane.xlu0 %286
        %288 = vadd.xlane.f32.xlu0 %v269
        %v289 = vpop.xlane.xlu0 %288
        %290 = vadd.xlane.f32.xlu0 %v270
        %v291 = vpop.xlane.xlu0 %290
        %292 = vadd.xlane.f32.xlu0 %v271
        %v293 = vpop.xlane.xlu0 %292
        %294 = vadd.xlane.f32.xlu0 %v272
        %v295 = vpop.xlane.xlu0 %294
        %296 = vadd.xlane.f32.xlu0 %v273
        %v297 = vpop.xlane.xlu0 %296
        %298 = vadd.xlane.f32.xlu0 %v274
        %v299 = vpop.xlane.xlu0 %298
        %300 = vadd.xlane.f32.xlu0 %v275
        %v301 = vpop.xlane.xlu0 %300
        %302 = vadd.xlane.f32.xlu0 %v276
        %v303 = vpop.xlane.xlu0 %302
        %304 = vadd.xlane.f32.xlu0 %v277
        %v305 = vpop.xlane.xlu0 %304
        %306 = vadd.xlane.f32.xlu0 %v278
        %v307 = vpop.xlane.xlu0 %306
        %308 = vadd.xlane.f32.xlu0 %v279
        %v309 = vpop.xlane.xlu0 %308
        %310 = vadd.xlane.f32.xlu0 %v280
        %v311 = vpop.xlane.xlu0 %310
        %312 = vadd.xlane.f32.xlu0 %v281
        %v313 = vpop.xlane.xlu0 %312
        %v314 = vmul.f32 %v233, %v233
        %v315 = vmul.f32 %v234, %v234
        %v316 = vmul.f32 %v235, %v235
        %v317 = vmul.f32 %v236, %v236
        %v318 = vmul.f32 %v237, %v237
        %v319 = vmul.f32 %v238, %v238
        %v320 = vmul.f32 %v239, %v239
        %v321 = vmul.f32 %v240, %v240
        %v322 = vmul.f32 %v241, %v241
        %v323 = vmul.f32 %v242, %v242
        %v324 = vmul.f32 %v243, %v243
        %v325 = vmul.f32 %v244, %v244
        %v326 = vmul.f32 %v245, %v245
        %v327 = vmul.f32 %v246, %v246
        %v328 = vmul.f32 %v247, %v247
        %v329 = vmul.f32 %v248, %v248
        %330 = vadd.xlane.f32.xlu0 %v314
        %v331 = vpop.xlane.xlu0 %330
        %332 = vadd.xlane.f32.xlu0 %v315
        %v333 = vpop.xlane.xlu0 %332
        %334 = vadd.xlane.f32.xlu0 %v316
        %v335 = vpop.xlane.xlu0 %334
        %336 = vadd.xlane.f32.xlu0 %v317
        %v337 = vpop.xlane.xlu0 %336
        %338 = vadd.xlane.f32.xlu0 %v318
        %v339 = vpop.xlane.xlu0 %338
        %340 = vadd.xlane.f32.xlu0 %v319
        %v341 = vpop.xlane.xlu0 %340
        %342 = vadd.xlane.f32.xlu0 %v320
        %v343 = vpop.xlane.xlu0 %342
        %344 = vadd.xlane.f32.xlu0 %v321
        %v345 = vpop.xlane.xlu0 %344
        %346 = vadd.xlane.f32.xlu0 %v322
        %v347 = vpop.xlane.xlu0 %346
        %348 = vadd.xlane.f32.xlu0 %v323
        %v349 = vpop.xlane.xlu0 %348
        %350 = vadd.xlane.f32.xlu0 %v324
        %v351 = vpop.xlane.xlu0 %350
        %352 = vadd.xlane.f32.xlu0 %v325
        %v353 = vpop.xlane.xlu0 %352
        %354 = vadd.xlane.f32.xlu0 %v326
        %v355 = vpop.xlane.xlu0 %354
        %356 = vadd.xlane.f32.xlu0 %v327
        %v357 = vpop.xlane.xlu0 %356
        %358 = vadd.xlane.f32.xlu0 %v328
        %v359 = vpop.xlane.xlu0 %358
        %360 = vadd.xlane.f32.xlu0 %v329
        %v361 = vpop.xlane.xlu0 %360
        %v362 = vrsqrt.pop %v283
        %v363 = vmul.f32 %v283, %v362
        %vm364 = vcmp.eq.f32.partialorder %v283, inf
        %v365 = vsel %vm364, %v283, %v363
        %vm366 = vcmp.eq.f32.partialorder %v283, 0.0
        %v367 = vand.u32 %v283, 2147483648
        %v368 = vsel %vm366, %v367, %v365
        %v369 = vrsqrt.pop %v285
        %v370 = vmul.f32 %v285, %v369
        %vm371 = vcmp.eq.f32.partialorder %v285, inf
        %v372 = vsel %vm371, %v285, %v370
        %vm373 = vcmp.eq.f32.partialorder %v285, 0.0
        %v374 = vand.u32 %v285, 2147483648
        %v375 = vsel %vm373, %v374, %v372
        %v376 = vrsqrt.pop %v287
        %v377 = vmul.f32 %v287, %v376
        %vm378 = vcmp.eq.f32.partialorder %v287, inf
        %v379 = vsel %vm378, %v287, %v377
        %vm380 = vcmp.eq.f32.partialorder %v287, 0.0
        %v381 = vand.u32 %v287, 2147483648
        %v382 = vsel %vm380, %v381, %v379
        %v383 = vrsqrt.pop %v289
        %v384 = vmul.f32 %v289, %v383
        %vm385 = vcmp.eq.f32.partialorder %v289, inf
        %v386 = vsel %vm385, %v289, %v384
        %vm387 = vcmp.eq.f32.partialorder %v289, 0.0
        %v388 = vand.u32 %v289, 2147483648
        %v389 = vsel %vm387, %v388, %v386
        %v390 = vrsqrt.pop %v291
        %v391 = vmul.f32 %v291, %v390
        %vm392 = vcmp.eq.f32.partialorder %v291, inf
        %v393 = vsel %vm392, %v291, %v391
        %vm394 = vcmp.eq.f32.partialorder %v291, 0.0
        %v395 = vand.u32 %v291, 2147483648
        %v396 = vsel %vm394, %v395, %v393
        %v397 = vrsqrt.pop %v293
        %v398 = vmul.f32 %v293, %v397
        %vm399 = vcmp.eq.f32.partialorder %v293, inf
        %v400 = vsel %vm399, %v293, %v398
        %vm401 = vcmp.eq.f32.partialorder %v293, 0.0
        %v402 = vand.u32 %v293, 2147483648
        %v403 = vsel %vm401, %v402, %v400
        %v404 = vrsqrt.pop %v295
        %v405 = vmul.f32 %v295, %v404
        %vm406 = vcmp.eq.f32.partialorder %v295, inf
        %v407 = vsel %vm406, %v295, %v405
        %vm408 = vcmp.eq.f32.partialorder %v295, 0.0
        %v409 = vand.u32 %v295, 2147483648
        %v410 = vsel %vm408, %v409, %v407
        %v411 = vrsqrt.pop %v297
        %v412 = vmul.f32 %v297, %v411
        %vm413 = vcmp.eq.f32.partialorder %v297, inf
        %v414 = vsel %vm413, %v297, %v412
        %vm415 = vcmp.eq.f32.partialorder %v297, 0.0
        %v416 = vand.u32 %v297, 2147483648
        %v417 = vsel %vm415, %v416, %v414
        %v418 = vrsqrt.pop %v299
        %v419 = vmul.f32 %v299, %v418
        %vm420 = vcmp.eq.f32.partialorder %v299, inf
        %v421 = vsel %vm420, %v299, %v419
        %vm422 = vcmp.eq.f32.partialorder %v299, 0.0
        %v423 = vand.u32 %v299, 2147483648
        %v424 = vsel %vm422, %v423, %v421
        %v425 = vrsqrt.pop %v301
        %v426 = vmul.f32 %v301, %v425
        %vm427 = vcmp.eq.f32.partialorder %v301, inf
        %v428 = vsel %vm427, %v301, %v426
        %vm429 = vcmp.eq.f32.partialorder %v301, 0.0
        %v430 = vand.u32 %v301, 2147483648
        %v431 = vsel %vm429, %v430, %v428
        %v432 = vrsqrt.pop %v303
        %v433 = vmul.f32 %v303, %v432
        %vm434 = vcmp.eq.f32.partialorder %v303, inf
        %v435 = vsel %vm434, %v303, %v433
        %vm436 = vcmp.eq.f32.partialorder %v303, 0.0
        %v437 = vand.u32 %v303, 2147483648
        %v438 = vsel %vm436, %v437, %v435
        %v439 = vrsqrt.pop %v305
        %v440 = vmul.f32 %v305, %v439
        %vm441 = vcmp.eq.f32.partialorder %v305, inf
        %v442 = vsel %vm441, %v305, %v440
        %vm443 = vcmp.eq.f32.partialorder %v305, 0.0
        %v444 = vand.u32 %v305, 2147483648
        %v445 = vsel %vm443, %v444, %v442
        %v446 = vrsqrt.pop %v307
        %v447 = vmul.f32 %v307, %v446
        %vm448 = vcmp.eq.f32.partialorder %v307, inf
        %v449 = vsel %vm448, %v307, %v447
        %vm450 = vcmp.eq.f32.partialorder %v307, 0.0
        %v451 = vand.u32 %v307, 2147483648
        %v452 = vsel %vm450, %v451, %v449
        %v453 = vrsqrt.pop %v309
        %v454 = vmul.f32 %v309, %v453
        %vm455 = vcmp.eq.f32.partialorder %v309, inf
        %v456 = vsel %vm455, %v309, %v454
        %vm457 = vcmp.eq.f32.partialorder %v309, 0.0
        %v458 = vand.u32 %v309, 2147483648
        %v459 = vsel %vm457, %v458, %v456
        %v460 = vrsqrt.pop %v311
        %v461 = vmul.f32 %v311, %v460
        %vm462 = vcmp.eq.f32.partialorder %v311, inf
        %v463 = vsel %vm462, %v311, %v461
        %vm464 = vcmp.eq.f32.partialorder %v311, 0.0
        %v465 = vand.u32 %v311, 2147483648
        %v466 = vsel %vm464, %v465, %v463
        %v467 = vrsqrt.pop %v313
        %v468 = vmul.f32 %v313, %v467
        %vm469 = vcmp.eq.f32.partialorder %v313, inf
        %v470 = vsel %vm469, %v313, %v468
        %vm471 = vcmp.eq.f32.partialorder %v313, 0.0
        %v472 = vand.u32 %v313, 2147483648
        %v473 = vsel %vm471, %v472, %v470
        %v474 = vmax.f32 %v368, 1e-05
        %v475 = vmax.f32 %v375, 1e-05
        %v476 = vmax.f32 %v382, 1e-05
        %v477 = vmax.f32 %v389, 1e-05
        %v478 = vmax.f32 %v396, 1e-05
        %v479 = vmax.f32 %v403, 1e-05
        %v480 = vmax.f32 %v410, 1e-05
        %v481 = vmax.f32 %v417, 1e-05
        %v482 = vmax.f32 %v424, 1e-05
        %v483 = vmax.f32 %v431, 1e-05
        %v484 = vmax.f32 %v438, 1e-05
        %v485 = vmax.f32 %v445, 1e-05
        %v486 = vmax.f32 %v452, 1e-05
        %v487 = vmax.f32 %v459, 1e-05
        %v488 = vmax.f32 %v466, 1e-05
        %v489 = vmax.f32 %v473, 1e-05
        %v490 = vtanh.pop %v474
        %v491 = vtanh.pop %v475
        %v492 = vtanh.pop %v476
        %v493 = vtanh.pop %v477
        %v494 = vtanh.pop %v478
        %v495 = vtanh.pop %v479
        %v496 = vtanh.pop %v480
        %v497 = vtanh.pop %v481
        %v498 = vtanh.pop %v482
        %v499 = vtanh.pop %v483
        %v500 = vtanh.pop %v484
        %v501 = vtanh.pop %v485
        %v502 = vtanh.pop %v486
        %v503 = vtanh.pop %v487
        %v504 = vtanh.pop %v488
        %v505 = vtanh.pop %v489
        %v506 = vrcp.pop %v474
        %v507 = vmul.f32 %v490, %v506
        %v508 = vrcp.pop %v475
        %v509 = vmul.f32 %v491, %v508
        %v510 = vrcp.pop %v476
        %v511 = vmul.f32 %v492, %v510
        %v512 = vrcp.pop %v477
        %v513 = vmul.f32 %v493, %v512
        %v514 = vrcp.pop %v478
        %v515 = vmul.f32 %v494, %v514
        %v516 = vrcp.pop %v479
        %v517 = vmul.f32 %v495, %v516
        %v518 = vrcp.pop %v480
        %v519 = vmul.f32 %v496, %v518
        %v520 = vrcp.pop %v481
        %v521 = vmul.f32 %v497, %v520
        %v522 = vrcp.pop %v482
        %v523 = vmul.f32 %v498, %v522
        %v524 = vrcp.pop %v483
        %v525 = vmul.f32 %v499, %v524
        %v526 = vrcp.pop %v484
        %v527 = vmul.f32 %v500, %v526
        %v528 = vrcp.pop %v485
        %v529 = vmul.f32 %v501, %v528
        %v530 = vrcp.pop %v486
        %v531 = vmul.f32 %v502, %v530
        %v532 = vrcp.pop %v487
        %v533 = vmul.f32 %v503, %v532
        %v534 = vrcp.pop %v488
        %v535 = vmul.f32 %v504, %v534
        %v536 = vrcp.pop %v489
        %v537 = vmul.f32 %v505, %v536
        %v538 = vmul.f32 %v507, %v249
        %v539 = vmul.f32 %v509, %v250
        %v540 = vmul.f32 %v511, %v251
        %v541 = vmul.f32 %v513, %v252
        %v542 = vmul.f32 %v515, %v253
        %v543 = vmul.f32 %v517, %v254
        %v544 = vmul.f32 %v519, %v255
        %v545 = vmul.f32 %v521, %v256
        %v546 = vmul.f32 %v523, %v257
        %v547 = vmul.f32 %v525, %v258
        %v548 = vmul.f32 %v527, %v259
        %v549 = vmul.f32 %v529, %v260
        %v550 = vmul.f32 %v531, %v261
        %v551 = vmul.f32 %v533, %v262
        %v552 = vmul.f32 %v535, %v263
        %v553 = vmul.f32 %v537, %v264
        %v554 = vmul.f32 %v507, %v368
        %v555 = vmul.f32 %v509, %v375
        %v556 = vmul.f32 %v511, %v382
        %v557 = vmul.f32 %v513, %v389
        %v558 = vmul.f32 %v515, %v396
        %v559 = vmul.f32 %v517, %v403
        %v560 = vmul.f32 %v519, %v410
        %v561 = vmul.f32 %v521, %v417
        %v562 = vmul.f32 %v523, %v424
        %v563 = vmul.f32 %v525, %v431
        %v564 = vmul.f32 %v527, %v438
        %v565 = vmul.f32 %v529, %v445
        %v566 = vmul.f32 %v531, %v452
        %v567 = vmul.f32 %v533, %v459
        %v568 = vmul.f32 %v535, %v466
        %v569 = vmul.f32 %v537, %v473
        %v570 = vmax.f32 %v554, 1e-05
        %v571 = vmax.f32 %v555, 1e-05
        %v572 = vmax.f32 %v556, 1e-05
        %v573 = vmax.f32 %v557, 1e-05
        %v574 = vmax.f32 %v558, 1e-05
        %v575 = vmax.f32 %v559, 1e-05
        %v576 = vmax.f32 %v560, 1e-05
        %v577 = vmax.f32 %v561, 1e-05
        %v578 = vmax.f32 %v562, 1e-05
        %v579 = vmax.f32 %v563, 1e-05
        %v580 = vmax.f32 %v564, 1e-05
        %v581 = vmax.f32 %v565, 1e-05
        %v582 = vmax.f32 %v566, 1e-05
        %v583 = vmax.f32 %v567, 1e-05
        %v584 = vmax.f32 %v568, 1e-05
        %v585 = vmax.f32 %v569, 1e-05
        %vm586 = vcmp.gt.f32.partialorder %v570, 0.999
        %vm587 = vcmp.gt.f32.partialorder %v571, 0.999
        %vm588 = vcmp.gt.f32.partialorder %v572, 0.999
        %vm589 = vcmp.gt.f32.partialorder %v573, 0.999
        %vm590 = vcmp.gt.f32.partialorder %v574, 0.999
        %vm591 = vcmp.gt.f32.partialorder %v575, 0.999
        %vm592 = vcmp.gt.f32.partialorder %v576, 0.999
        %vm593 = vcmp.gt.f32.partialorder %v577, 0.999
        %vm594 = vcmp.gt.f32.partialorder %v578, 0.999
        %vm595 = vcmp.gt.f32.partialorder %v579, 0.999
        %vm596 = vcmp.gt.f32.partialorder %v580, 0.999
        %vm597 = vcmp.gt.f32.partialorder %v581, 0.999
        %vm598 = vcmp.gt.f32.partialorder %v582, 0.999
        %vm599 = vcmp.gt.f32.partialorder %v583, 0.999
        %vm600 = vcmp.gt.f32.partialorder %v584, 0.999
        %vm601 = vcmp.gt.f32.partialorder %v585, 0.999
        %v602 = vrcp.pop %v570
        %v603 = vmul.f32 0.999, %v602
        %v604 = vrcp.pop %v571
        %v605 = vmul.f32 0.999, %v604
        %v606 = vrcp.pop %v572
        %v607 = vmul.f32 0.999, %v606
        %v608 = vrcp.pop %v573
        %v609 = vmul.f32 0.999, %v608
        %v610 = vrcp.pop %v574
        %v611 = vmul.f32 0.999, %v610
        %v612 = vrcp.pop %v575
        %v613 = vmul.f32 0.999, %v612
        %v614 = vrcp.pop %v576
        %v615 = vmul.f32 0.999, %v614
        %v616 = vrcp.pop %v577
        %v617 = vmul.f32 0.999, %v616
        %v618 = vrcp.pop %v578
        %v619 = vmul.f32 0.999, %v618
        %v620 = vrcp.pop %v579
        %v621 = vmul.f32 0.999, %v620
        %v622 = vrcp.pop %v580
        %v623 = vmul.f32 0.999, %v622
        %v624 = vrcp.pop %v581
        %v625 = vmul.f32 0.999, %v624
        %v626 = vrcp.pop %v582
        %v627 = vmul.f32 0.999, %v626
        %v628 = vrcp.pop %v583
        %v629 = vmul.f32 0.999, %v628
        %v630 = vrcp.pop %v584
        %v631 = vmul.f32 0.999, %v630
        %v632 = vrcp.pop %v585
        %v633 = vmul.f32 0.999, %v632
        %v634 = vsel %vm586, %v603, 1.0
        %v635 = vsel %vm587, %v605, 1.0
        %v636 = vsel %vm588, %v607, 1.0
        %v637 = vsel %vm589, %v609, 1.0
        %v638 = vsel %vm590, %v611, 1.0
        %v639 = vsel %vm591, %v613, 1.0
        %v640 = vsel %vm592, %v615, 1.0
        %v641 = vsel %vm593, %v617, 1.0
        %v642 = vsel %vm594, %v619, 1.0
        %v643 = vsel %vm595, %v621, 1.0
        %v644 = vsel %vm596, %v623, 1.0
        %v645 = vsel %vm597, %v625, 1.0
        %v646 = vsel %vm598, %v627, 1.0
        %v647 = vsel %vm599, %v629, 1.0
        %v648 = vsel %vm600, %v631, 1.0
        %v649 = vsel %vm601, %v633, 1.0
        %v650 = vmul.f32 %v634, %v538
        %v651 = vmul.f32 %v635, %v539
        %v652 = vmul.f32 %v636, %v540
        %v653 = vmul.f32 %v637, %v541
        %v654 = vmul.f32 %v638, %v542
        %v655 = vmul.f32 %v639, %v543
        %v656 = vmul.f32 %v640, %v544
        %v657 = vmul.f32 %v641, %v545
        %v658 = vmul.f32 %v642, %v546
        %v659 = vmul.f32 %v643, %v547
        %v660 = vmul.f32 %v644, %v548
        %v661 = vmul.f32 %v645, %v549
        %v662 = vmul.f32 %v646, %v550
        %v663 = vmul.f32 %v647, %v551
        %v664 = vmul.f32 %v648, %v552
        %v665 = vmul.f32 %v649, %v553
        %v666 = vmul.f32 %v634, %v554
        %v667 = vmul.f32 %v635, %v555
        %v668 = vmul.f32 %v636, %v556
        %v669 = vmul.f32 %v637, %v557
        %v670 = vmul.f32 %v638, %v558
        %v671 = vmul.f32 %v639, %v559
        %v672 = vmul.f32 %v640, %v560
        %v673 = vmul.f32 %v641, %v561
        %v674 = vmul.f32 %v642, %v562
        %v675 = vmul.f32 %v643, %v563
        %v676 = vmul.f32 %v644, %v564
        %v677 = vmul.f32 %v645, %v565
        %v678 = vmul.f32 %v646, %v566
        %v679 = vmul.f32 %v647, %v567
        %v680 = vmul.f32 %v648, %v568
        %v681 = vmul.f32 %v649, %v569
        %v682 = vmul.f32 %v666, %v666
        %v683 = vmul.f32 %v667, %v667
        %v684 = vmul.f32 %v668, %v668
        %v685 = vmul.f32 %v669, %v669
        %v686 = vmul.f32 %v670, %v670
        %v687 = vmul.f32 %v671, %v671
        %v688 = vmul.f32 %v672, %v672
        %v689 = vmul.f32 %v673, %v673
        %v690 = vmul.f32 %v674, %v674
        %v691 = vmul.f32 %v675, %v675
        %v692 = vmul.f32 %v676, %v676
        %v693 = vmul.f32 %v677, %v677
        %v694 = vmul.f32 %v678, %v678
        %v695 = vmul.f32 %v679, %v679
        %v696 = vmul.f32 %v680, %v680
        %v697 = vmul.f32 %v681, %v681
        %v698 = vmul.f32 %v233, %v650
        %v699 = vmul.f32 %v234, %v651
        %v700 = vmul.f32 %v235, %v652
        %v701 = vmul.f32 %v236, %v653
        %v702 = vmul.f32 %v237, %v654
        %v703 = vmul.f32 %v238, %v655
        %v704 = vmul.f32 %v239, %v656
        %v705 = vmul.f32 %v240, %v657
        %v706 = vmul.f32 %v241, %v658
        %v707 = vmul.f32 %v242, %v659
        %v708 = vmul.f32 %v243, %v660
        %v709 = vmul.f32 %v244, %v661
        %v710 = vmul.f32 %v245, %v662
        %v711 = vmul.f32 %v246, %v663
        %v712 = vmul.f32 %v247, %v664
        %v713 = vmul.f32 %v248, %v665
        %714 = vadd.xlane.f32.xlu0 %v698
        %v715 = vpop.xlane.xlu0 %714
        %716 = vadd.xlane.f32.xlu0 %v699
        %v717 = vpop.xlane.xlu0 %716
        %718 = vadd.xlane.f32.xlu0 %v700
        %v719 = vpop.xlane.xlu0 %718
        %720 = vadd.xlane.f32.xlu0 %v701
        %v721 = vpop.xlane.xlu0 %720
        %722 = vadd.xlane.f32.xlu0 %v702
        %v723 = vpop.xlane.xlu0 %722
        %724 = vadd.xlane.f32.xlu0 %v703
        %v725 = vpop.xlane.xlu0 %724
        %726 = vadd.xlane.f32.xlu0 %v704
        %v727 = vpop.xlane.xlu0 %726
        %728 = vadd.xlane.f32.xlu0 %v705
        %v729 = vpop.xlane.xlu0 %728
        %730 = vadd.xlane.f32.xlu0 %v706
        %v731 = vpop.xlane.xlu0 %730
        %732 = vadd.xlane.f32.xlu0 %v707
        %v733 = vpop.xlane.xlu0 %732
        %734 = vadd.xlane.f32.xlu0 %v708
        %v735 = vpop.xlane.xlu0 %734
        %736 = vadd.xlane.f32.xlu0 %v709
        %v737 = vpop.xlane.xlu0 %736
        %738 = vadd.xlane.f32.xlu0 %v710
        %v739 = vpop.xlane.xlu0 %738
        %740 = vadd.xlane.f32.xlu0 %v711
        %v741 = vpop.xlane.xlu0 %740
        %742 = vadd.xlane.f32.xlu0 %v712
        %v743 = vpop.xlane.xlu0 %742
        %744 = vadd.xlane.f32.xlu0 %v713
        %v745 = vpop.xlane.xlu0 %744
        %v746 = vsub.f32 0.0, %v715
        %v747 = vsub.f32 0.0, %v717
        %v748 = vsub.f32 0.0, %v719
        %v749 = vsub.f32 0.0, %v721
        %v750 = vsub.f32 0.0, %v723
        %v751 = vsub.f32 0.0, %v725
        %v752 = vsub.f32 0.0, %v727
        %v753 = vsub.f32 0.0, %v729
        %v754 = vsub.f32 0.0, %v731
        %v755 = vsub.f32 0.0, %v733
        %v756 = vsub.f32 0.0, %v735
        %v757 = vsub.f32 0.0, %v737
        %v758 = vsub.f32 0.0, %v739
        %v759 = vsub.f32 0.0, %v741
        %v760 = vsub.f32 0.0, %v743
        %v761 = vsub.f32 0.0, %v745
        %v762 = vmul.f32 %v746, 2.0
        %v763 = vmul.f32 %v747, 2.0
        %v764 = vmul.f32 %v748, 2.0
        %v765 = vmul.f32 %v749, 2.0
        %v766 = vmul.f32 %v750, 2.0
        %v767 = vmul.f32 %v751, 2.0
        %v768 = vmul.f32 %v752, 2.0
        %v769 = vmul.f32 %v753, 2.0
        %v770 = vmul.f32 %v754, 2.0
        %v771 = vmul.f32 %v755, 2.0
        %v772 = vmul.f32 %v756, 2.0
        %v773 = vmul.f32 %v757, 2.0
        %v774 = vmul.f32 %v758, 2.0
        %v775 = vmul.f32 %v759, 2.0
        %v776 = vmul.f32 %v760, 2.0
        %v777 = vmul.f32 %v761, 2.0
        %v778 = vadd.f32 %v762, 1.0
        %v779 = vadd.f32 %v763, 1.0
        %v780 = vadd.f32 %v764, 1.0
        %v781 = vadd.f32 %v765, 1.0
        %v782 = vadd.f32 %v766, 1.0
        %v783 = vadd.f32 %v767, 1.0
        %v784 = vadd.f32 %v768, 1.0
        %v785 = vadd.f32 %v769, 1.0
        %v786 = vadd.f32 %v770, 1.0
        %v787 = vadd.f32 %v771, 1.0
        %v788 = vadd.f32 %v772, 1.0
        %v789 = vadd.f32 %v773, 1.0
        %v790 = vadd.f32 %v774, 1.0
        %v791 = vadd.f32 %v775, 1.0
        %v792 = vadd.f32 %v776, 1.0
        %v793 = vadd.f32 %v777, 1.0
        %v794 = vadd.f32 %v778, %v682
        %v795 = vadd.f32 %v779, %v683
        %v796 = vadd.f32 %v780, %v684
        %v797 = vadd.f32 %v781, %v685
        %v798 = vadd.f32 %v782, %v686
        %v799 = vadd.f32 %v783, %v687
        %v800 = vadd.f32 %v784, %v688
        %v801 = vadd.f32 %v785, %v689
        %v802 = vadd.f32 %v786, %v690
        %v803 = vadd.f32 %v787, %v691
        %v804 = vadd.f32 %v788, %v692
        %v805 = vadd.f32 %v789, %v693
        %v806 = vadd.f32 %v790, %v694
        %v807 = vadd.f32 %v791, %v695
        %v808 = vadd.f32 %v792, %v696
        %v809 = vadd.f32 %v793, %v697
        %v810 = vsub.f32 0.0, %v233
        %v811 = vsub.f32 0.0, %v234
        %v812 = vsub.f32 0.0, %v235
        %v813 = vsub.f32 0.0, %v236
        %v814 = vsub.f32 0.0, %v237
        %v815 = vsub.f32 0.0, %v238
        %v816 = vsub.f32 0.0, %v239
        %v817 = vsub.f32 0.0, %v240
        %v818 = vsub.f32 0.0, %v241
        %v819 = vsub.f32 0.0, %v242
        %v820 = vsub.f32 0.0, %v243
        %v821 = vsub.f32 0.0, %v244
        %v822 = vsub.f32 0.0, %v245
        %v823 = vsub.f32 0.0, %v246
        %v824 = vsub.f32 0.0, %v247
        %v825 = vsub.f32 0.0, %v248
        %v826 = vmul.f32 %v794, %v810
        %v827 = vmul.f32 %v795, %v811
        %v828 = vmul.f32 %v796, %v812
        %v829 = vmul.f32 %v797, %v813
        %v830 = vmul.f32 %v798, %v814
        %v831 = vmul.f32 %v799, %v815
        %v832 = vmul.f32 %v800, %v816
        %v833 = vmul.f32 %v801, %v817
        %v834 = vmul.f32 %v802, %v818
        %v835 = vmul.f32 %v803, %v819
        %v836 = vmul.f32 %v804, %v820
        %v837 = vmul.f32 %v805, %v821
        %v838 = vmul.f32 %v806, %v822
        %v839 = vmul.f32 %v807, %v823
        %v840 = vmul.f32 %v808, %v824
        %v841 = vmul.f32 %v809, %v825
        %v842 = vsub.f32 1.0, %v331
        %v843 = vsub.f32 1.0, %v333
        %v844 = vsub.f32 1.0, %v335
        %v845 = vsub.f32 1.0, %v337
        %v846 = vsub.f32 1.0, %v339
        %v847 = vsub.f32 1.0, %v341
        %v848 = vsub.f32 1.0, %v343
        %v849 = vsub.f32 1.0, %v345
        %v850 = vsub.f32 1.0, %v347
        %v851 = vsub.f32 1.0, %v349
        %v852 = vsub.f32 1.0, %v351
        %v853 = vsub.f32 1.0, %v353
        %v854 = vsub.f32 1.0, %v355
        %v855 = vsub.f32 1.0, %v357
        %v856 = vsub.f32 1.0, %v359
        %v857 = vsub.f32 1.0, %v361
        %v858 = vmul.f32 %v842, %v650
        %v859 = vmul.f32 %v843, %v651
        %v860 = vmul.f32 %v844, %v652
        %v861 = vmul.f32 %v845, %v653
        %v862 = vmul.f32 %v846, %v654
        %v863 = vmul.f32 %v847, %v655
        %v864 = vmul.f32 %v848, %v656
        %v865 = vmul.f32 %v849, %v657
        %v866 = vmul.f32 %v850, %v658
        %v867 = vmul.f32 %v851, %v659
        %v868 = vmul.f32 %v852, %v660
        %v869 = vmul.f32 %v853, %v661
        %v870 = vmul.f32 %v854, %v662
        %v871 = vmul.f32 %v855, %v663
        %v872 = vmul.f32 %v856, %v664
        %v873 = vmul.f32 %v857, %v665
        %v874 = vadd.f32 %v826, %v858
        %v875 = vadd.f32 %v827, %v859
        %v876 = vadd.f32 %v828, %v860
        %v877 = vadd.f32 %v829, %v861
        %v878 = vadd.f32 %v830, %v862
        %v879 = vadd.f32 %v831, %v863
        %v880 = vadd.f32 %v832, %v864
        %v881 = vadd.f32 %v833, %v865
        %v882 = vadd.f32 %v834, %v866
        %v883 = vadd.f32 %v835, %v867
        %v884 = vadd.f32 %v836, %v868
        %v885 = vadd.f32 %v837, %v869
        %v886 = vadd.f32 %v838, %v870
        %v887 = vadd.f32 %v839, %v871
        %v888 = vadd.f32 %v840, %v872
        %v889 = vadd.f32 %v841, %v873
        %v890 = vmul.f32 %v331, %v682
        %v891 = vmul.f32 %v333, %v683
        %v892 = vmul.f32 %v335, %v684
        %v893 = vmul.f32 %v337, %v685
        %v894 = vmul.f32 %v339, %v686
        %v895 = vmul.f32 %v341, %v687
        %v896 = vmul.f32 %v343, %v688
        %v897 = vmul.f32 %v345, %v689
        %v898 = vmul.f32 %v347, %v690
        %v899 = vmul.f32 %v349, %v691
        %v900 = vmul.f32 %v351, %v692
        %v901 = vmul.f32 %v353, %v693
        %v902 = vmul.f32 %v355, %v694
        %v903 = vmul.f32 %v357, %v695
        %v904 = vmul.f32 %v359, %v696
        %v905 = vmul.f32 %v361, %v697
        %v906 = vadd.f32 %v778, %v890
        %v907 = vadd.f32 %v779, %v891
        %v908 = vadd.f32 %v780, %v892
        %v909 = vadd.f32 %v781, %v893
        %v910 = vadd.f32 %v782, %v894
        %v911 = vadd.f32 %v783, %v895
        %v912 = vadd.f32 %v784, %v896
        %v913 = vadd.f32 %v785, %v897
        %v914 = vadd.f32 %v786, %v898
        %v915 = vadd.f32 %v787, %v899
        %v916 = vadd.f32 %v788, %v900
        %v917 = vadd.f32 %v789, %v901
        %v918 = vadd.f32 %v790, %v902
        %v919 = vadd.f32 %v791, %v903
        %v920 = vadd.f32 %v792, %v904
        %v921 = vadd.f32 %v793, %v905
        %v922 = vmax.f32 %v906, 1e-15
        %v923 = vmax.f32 %v907, 1e-15
        %v924 = vmax.f32 %v908, 1e-15
        %v925 = vmax.f32 %v909, 1e-15
        %v926 = vmax.f32 %v910, 1e-15
        %v927 = vmax.f32 %v911, 1e-15
        %v928 = vmax.f32 %v912, 1e-15
        %v929 = vmax.f32 %v913, 1e-15
        %v930 = vmax.f32 %v914, 1e-15
        %v931 = vmax.f32 %v915, 1e-15
        %v932 = vmax.f32 %v916, 1e-15
        %v933 = vmax.f32 %v917, 1e-15
        %v934 = vmax.f32 %v918, 1e-15
        %v935 = vmax.f32 %v919, 1e-15
        %v936 = vmax.f32 %v920, 1e-15
        %v937 = vmax.f32 %v921, 1e-15
        %v938 = vrcp.pop %v922
        %v939 = vmul.f32 1.0, %v938
        %v940 = vrcp.pop %v923
        %v941 = vmul.f32 1.0, %v940
        %v942 = vrcp.pop %v924
        %v943 = vmul.f32 1.0, %v942
        %v944 = vrcp.pop %v925
        %v945 = vmul.f32 1.0, %v944
        %v946 = vrcp.pop %v926
        %v947 = vmul.f32 1.0, %v946
        %v948 = vrcp.pop %v927
        %v949 = vmul.f32 1.0, %v948
        %v950 = vrcp.pop %v928
        %v951 = vmul.f32 1.0, %v950
        %v952 = vrcp.pop %v929
        %v953 = vmul.f32 1.0, %v952
        %v954 = vrcp.pop %v930
        %v955 = vmul.f32 1.0, %v954
        %v956 = vrcp.pop %v931
        %v957 = vmul.f32 1.0, %v956
        %v958 = vrcp.pop %v932
        %v959 = vmul.f32 1.0, %v958
        %v960 = vrcp.pop %v933
        %v961 = vmul.f32 1.0, %v960
        %v962 = vrcp.pop %v934
        %v963 = vmul.f32 1.0, %v962
        %v964 = vrcp.pop %v935
        %v965 = vmul.f32 1.0, %v964
        %v966 = vrcp.pop %v936
        %v967 = vmul.f32 1.0, %v966
        %v968 = vrcp.pop %v937
        %v969 = vmul.f32 1.0, %v968
        %v970 = vmul.f32 %v874, %v939
        %v971 = vmul.f32 %v875, %v941
        %v972 = vmul.f32 %v876, %v943
        %v973 = vmul.f32 %v877, %v945
        %v974 = vmul.f32 %v878, %v947
        %v975 = vmul.f32 %v879, %v949
        %v976 = vmul.f32 %v880, %v951
        %v977 = vmul.f32 %v881, %v953
        %v978 = vmul.f32 %v882, %v955
        %v979 = vmul.f32 %v883, %v957
        %v980 = vmul.f32 %v884, %v959
        %v981 = vmul.f32 %v885, %v961
        %v982 = vmul.f32 %v886, %v963
        %v983 = vmul.f32 %v887, %v965
        %v984 = vmul.f32 %v888, %v967
        %v985 = vmul.f32 %v889, %v969
        %v986 = vmul.f32 %v970, %v970
        %v987 = vmul.f32 %v971, %v971
        %v988 = vmul.f32 %v972, %v972
        %v989 = vmul.f32 %v973, %v973
        %v990 = vmul.f32 %v974, %v974
        %v991 = vmul.f32 %v975, %v975
        %v992 = vmul.f32 %v976, %v976
        %v993 = vmul.f32 %v977, %v977
        %v994 = vmul.f32 %v978, %v978
        %v995 = vmul.f32 %v979, %v979
        %v996 = vmul.f32 %v980, %v980
        %v997 = vmul.f32 %v981, %v981
        %v998 = vmul.f32 %v982, %v982
        %v999 = vmul.f32 %v983, %v983
        %v1000 = vmul.f32 %v984, %v984
        %v1001 = vmul.f32 %v985, %v985
        %1002 = vadd.xlane.f32.xlu0 %v986
        %v1003 = vpop.xlane.xlu0 %1002
        %1004 = vadd.xlane.f32.xlu0 %v987
        %v1005 = vpop.xlane.xlu0 %1004
        %1006 = vadd.xlane.f32.xlu0 %v988
        %v1007 = vpop.xlane.xlu0 %1006
        %1008 = vadd.xlane.f32.xlu0 %v989
        %v1009 = vpop.xlane.xlu0 %1008
        %1010 = vadd.xlane.f32.xlu0 %v990
        %v1011 = vpop.xlane.xlu0 %1010
        %1012 = vadd.xlane.f32.xlu0 %v991
        %v1013 = vpop.xlane.xlu0 %1012
        %1014 = vadd.xlane.f32.xlu0 %v992
        %v1015 = vpop.xlane.xlu0 %1014
        %1016 = vadd.xlane.f32.xlu0 %v993
        %v1017 = vpop.xlane.xlu0 %1016
        %1018 = vadd.xlane.f32.xlu0 %v994
        %v1019 = vpop.xlane.xlu0 %1018
        %1020 = vadd.xlane.f32.xlu0 %v995
        %v1021 = vpop.xlane.xlu0 %1020
        %1022 = vadd.xlane.f32.xlu0 %v996
        %v1023 = vpop.xlane.xlu0 %1022
        %1024 = vadd.xlane.f32.xlu0 %v997
        %v1025 = vpop.xlane.xlu0 %1024
        %1026 = vadd.xlane.f32.xlu0 %v998
        %v1027 = vpop.xlane.xlu0 %1026
        %1028 = vadd.xlane.f32.xlu0 %v999
        %v1029 = vpop.xlane.xlu0 %1028
        %1030 = vadd.xlane.f32.xlu0 %v1000
        %v1031 = vpop.xlane.xlu0 %1030
        %1032 = vadd.xlane.f32.xlu0 %v1001
        %v1033 = vpop.xlane.xlu0 %1032
        %v1034 = vrsqrt.pop %v1003
        %v1035 = vmul.f32 %v1003, %v1034
        %vm1036 = vcmp.eq.f32.partialorder %v1003, inf
        %v1037 = vsel %vm1036, %v1003, %v1035
        %vm1038 = vcmp.eq.f32.partialorder %v1003, 0.0
        %v1039 = vand.u32 %v1003, 2147483648
        %v1040 = vsel %vm1038, %v1039, %v1037
        %v1041 = vrsqrt.pop %v1005
        %v1042 = vmul.f32 %v1005, %v1041
        %vm1043 = vcmp.eq.f32.partialorder %v1005, inf
        %v1044 = vsel %vm1043, %v1005, %v1042
        %vm1045 = vcmp.eq.f32.partialorder %v1005, 0.0
        %v1046 = vand.u32 %v1005, 2147483648
        %v1047 = vsel %vm1045, %v1046, %v1044
        %v1048 = vrsqrt.pop %v1007
        %v1049 = vmul.f32 %v1007, %v1048
        %vm1050 = vcmp.eq.f32.partialorder %v1007, inf
        %v1051 = vsel %vm1050, %v1007, %v1049
        %vm1052 = vcmp.eq.f32.partialorder %v1007, 0.0
        %v1053 = vand.u32 %v1007, 2147483648
        %v1054 = vsel %vm1052, %v1053, %v1051
        %v1055 = vrsqrt.pop %v1009
        %v1056 = vmul.f32 %v1009, %v1055
        %vm1057 = vcmp.eq.f32.partialorder %v1009, inf
        %v1058 = vsel %vm1057, %v1009, %v1056
        %vm1059 = vcmp.eq.f32.partialorder %v1009, 0.0
        %v1060 = vand.u32 %v1009, 2147483648
        %v1061 = vsel %vm1059, %v1060, %v1058
        %v1062 = vrsqrt.pop %v1011
        %v1063 = vmul.f32 %v1011, %v1062
        %vm1064 = vcmp.eq.f32.partialorder %v1011, inf
        %v1065 = vsel %vm1064, %v1011, %v1063
        %vm1066 = vcmp.eq.f32.partialorder %v1011, 0.0
        %v1067 = vand.u32 %v1011, 2147483648
        %v1068 = vsel %vm1066, %v1067, %v1065
        %v1069 = vrsqrt.pop %v1013
        %v1070 = vmul.f32 %v1013, %v1069
        %vm1071 = vcmp.eq.f32.partialorder %v1013, inf
        %v1072 = vsel %vm1071, %v1013, %v1070
        %vm1073 = vcmp.eq.f32.partialorder %v1013, 0.0
        %v1074 = vand.u32 %v1013, 2147483648
        %v1075 = vsel %vm1073, %v1074, %v1072
        %v1076 = vrsqrt.pop %v1015
        %v1077 = vmul.f32 %v1015, %v1076
        %vm1078 = vcmp.eq.f32.partialorder %v1015, inf
        %v1079 = vsel %vm1078, %v1015, %v1077
        %vm1080 = vcmp.eq.f32.partialorder %v1015, 0.0
        %v1081 = vand.u32 %v1015, 2147483648
        %v1082 = vsel %vm1080, %v1081, %v1079
        %v1083 = vrsqrt.pop %v1017
        %v1084 = vmul.f32 %v1017, %v1083
        %vm1085 = vcmp.eq.f32.partialorder %v1017, inf
        %v1086 = vsel %vm1085, %v1017, %v1084
        %vm1087 = vcmp.eq.f32.partialorder %v1017, 0.0
        %v1088 = vand.u32 %v1017, 2147483648
        %v1089 = vsel %vm1087, %v1088, %v1086
        %v1090 = vrsqrt.pop %v1019
        %v1091 = vmul.f32 %v1019, %v1090
        %vm1092 = vcmp.eq.f32.partialorder %v1019, inf
        %v1093 = vsel %vm1092, %v1019, %v1091
        %vm1094 = vcmp.eq.f32.partialorder %v1019, 0.0
        %v1095 = vand.u32 %v1019, 2147483648
        %v1096 = vsel %vm1094, %v1095, %v1093
        %v1097 = vrsqrt.pop %v1021
        %v1098 = vmul.f32 %v1021, %v1097
        %vm1099 = vcmp.eq.f32.partialorder %v1021, inf
        %v1100 = vsel %vm1099, %v1021, %v1098
        %vm1101 = vcmp.eq.f32.partialorder %v1021, 0.0
        %v1102 = vand.u32 %v1021, 2147483648
        %v1103 = vsel %vm1101, %v1102, %v1100
        %v1104 = vrsqrt.pop %v1023
        %v1105 = vmul.f32 %v1023, %v1104
        %vm1106 = vcmp.eq.f32.partialorder %v1023, inf
        %v1107 = vsel %vm1106, %v1023, %v1105
        %vm1108 = vcmp.eq.f32.partialorder %v1023, 0.0
        %v1109 = vand.u32 %v1023, 2147483648
        %v1110 = vsel %vm1108, %v1109, %v1107
        %v1111 = vrsqrt.pop %v1025
        %v1112 = vmul.f32 %v1025, %v1111
        %vm1113 = vcmp.eq.f32.partialorder %v1025, inf
        %v1114 = vsel %vm1113, %v1025, %v1112
        %vm1115 = vcmp.eq.f32.partialorder %v1025, 0.0
        %v1116 = vand.u32 %v1025, 2147483648
        %v1117 = vsel %vm1115, %v1116, %v1114
        %v1118 = vrsqrt.pop %v1027
        %v1119 = vmul.f32 %v1027, %v1118
        %vm1120 = vcmp.eq.f32.partialorder %v1027, inf
        %v1121 = vsel %vm1120, %v1027, %v1119
        %vm1122 = vcmp.eq.f32.partialorder %v1027, 0.0
        %v1123 = vand.u32 %v1027, 2147483648
        %v1124 = vsel %vm1122, %v1123, %v1121
        %v1125 = vrsqrt.pop %v1029
        %v1126 = vmul.f32 %v1029, %v1125
        %vm1127 = vcmp.eq.f32.partialorder %v1029, inf
        %v1128 = vsel %vm1127, %v1029, %v1126
        %vm1129 = vcmp.eq.f32.partialorder %v1029, 0.0
        %v1130 = vand.u32 %v1029, 2147483648
        %v1131 = vsel %vm1129, %v1130, %v1128
        %v1132 = vrsqrt.pop %v1031
        %v1133 = vmul.f32 %v1031, %v1132
        %vm1134 = vcmp.eq.f32.partialorder %v1031, inf
        %v1135 = vsel %vm1134, %v1031, %v1133
        %vm1136 = vcmp.eq.f32.partialorder %v1031, 0.0
        %v1137 = vand.u32 %v1031, 2147483648
        %v1138 = vsel %vm1136, %v1137, %v1135
        %v1139 = vrsqrt.pop %v1033
        %v1140 = vmul.f32 %v1033, %v1139
        %vm1141 = vcmp.eq.f32.partialorder %v1033, inf
        %v1142 = vsel %vm1141, %v1033, %v1140
        %vm1143 = vcmp.eq.f32.partialorder %v1033, 0.0
        %v1144 = vand.u32 %v1033, 2147483648
        %v1145 = vsel %vm1143, %v1144, %v1142
        %v1146 = vmax.f32 %v1040, -0.99999
        %v1147 = vmax.f32 %v1047, -0.99999
        %v1148 = vmax.f32 %v1054, -0.99999
        %v1149 = vmax.f32 %v1061, -0.99999
        %v1150 = vmax.f32 %v1068, -0.99999
        %v1151 = vmax.f32 %v1075, -0.99999
        %v1152 = vmax.f32 %v1082, -0.99999
        %v1153 = vmax.f32 %v1089, -0.99999
        %v1154 = vmax.f32 %v1096, -0.99999
        %v1155 = vmax.f32 %v1103, -0.99999
        %v1156 = vmax.f32 %v1110, -0.99999
        %v1157 = vmax.f32 %v1117, -0.99999
        %v1158 = vmax.f32 %v1124, -0.99999
        %v1159 = vmax.f32 %v1131, -0.99999
        %v1160 = vmax.f32 %v1138, -0.99999
        %v1161 = vmax.f32 %v1145, -0.99999
        %v1162 = vmin.f32 %v1146, 0.99999
        %v1163 = vmin.f32 %v1147, 0.99999
        %v1164 = vmin.f32 %v1148, 0.99999
        %v1165 = vmin.f32 %v1149, 0.99999
        %v1166 = vmin.f32 %v1150, 0.99999
        %v1167 = vmin.f32 %v1151, 0.99999
        %v1168 = vmin.f32 %v1152, 0.99999
        %v1169 = vmin.f32 %v1153, 0.99999
        %v1170 = vmin.f32 %v1154, 0.99999
        %v1171 = vmin.f32 %v1155, 0.99999
        %v1172 = vmin.f32 %v1156, 0.99999
        %v1173 = vmin.f32 %v1157, 0.99999
        %v1174 = vmin.f32 %v1158, 0.99999
        %v1175 = vmin.f32 %v1159, 0.99999
        %v1176 = vmin.f32 %v1160, 0.99999
        %v1177 = vmin.f32 %v1161, 0.99999
        %v1178 = vadd.f32 %v1162, 1.0
        %v1179 = vlog2.pop %v1178
        %v1180 = vmul.f32 %v1179, 0.6931472
        %v1181 = vmul.f32 -0.5, %v1162
        %v1182 = vadd.f32 %v1181, 1.0
        %v1183 = vmul.f32 %v1182, %v1162
        %v1184 = vand.u32 2147483647, %v1162
        %vm1185 = vcmp.lt.f32.partialorder %v1184, 0.0004427343
        %v1186 = vsel %vm1185, %v1183, %v1180
        %v1187 = vadd.f32 %v1163, 1.0
        %v1188 = vlog2.pop %v1187
        %v1189 = vmul.f32 %v1188, 0.6931472
        %v1190 = vmul.f32 -0.5, %v1163
        %v1191 = vadd.f32 %v1190, 1.0
        %v1192 = vmul.f32 %v1191, %v1163
        %v1193 = vand.u32 2147483647, %v1163
        %vm1194 = vcmp.lt.f32.partialorder %v1193, 0.0004427343
        %v1195 = vsel %vm1194, %v1192, %v1189
        %v1196 = vadd.f32 %v1164, 1.0
        %v1197 = vlog2.pop %v1196
        %v1198 = vmul.f32 %v1197, 0.6931472
        %v1199 = vmul.f32 -0.5, %v1164
        %v1200 = vadd.f32 %v1199, 1.0
        %v1201 = vmul.f32 %v1200, %v1164
        %v1202 = vand.u32 2147483647, %v1164
        %vm1203 = vcmp.lt.f32.partialorder %v1202, 0.0004427343
        %v1204 = vsel %vm1203, %v1201, %v1198
        %v1205 = vadd.f32 %v1165, 1.0
        %v1206 = vlog2.pop %v1205
        %v1207 = vmul.f32 %v1206, 0.6931472
        %v1208 = vmul.f32 -0.5, %v1165
        %v1209 = vadd.f32 %v1208, 1.0
        %v1210 = vmul.f32 %v1209, %v1165
        %v1211 = vand.u32 2147483647, %v1165
        %vm1212 = vcmp.lt.f32.partialorder %v1211, 0.0004427343
        %v1213 = vsel %vm1212, %v1210, %v1207
        %v1214 = vadd.f32 %v1166, 1.0
        %v1215 = vlog2.pop %v1214
        %v1216 = vmul.f32 %v1215, 0.6931472
        %v1217 = vmul.f32 -0.5, %v1166
        %v1218 = vadd.f32 %v1217, 1.0
        %v1219 = vmul.f32 %v1218, %v1166
        %v1220 = vand.u32 2147483647, %v1166
        %vm1221 = vcmp.lt.f32.partialorder %v1220, 0.0004427343
        %v1222 = vsel %vm1221, %v1219, %v1216
        %v1223 = vadd.f32 %v1167, 1.0
        %v1224 = vlog2.pop %v1223
        %v1225 = vmul.f32 %v1224, 0.6931472
        %v1226 = vmul.f32 -0.5, %v1167
        %v1227 = vadd.f32 %v1226, 1.0
        %v1228 = vmul.f32 %v1227, %v1167
        %v1229 = vand.u32 2147483647, %v1167
        %vm1230 = vcmp.lt.f32.partialorder %v1229, 0.0004427343
        %v1231 = vsel %vm1230, %v1228, %v1225
        %v1232 = vadd.f32 %v1168, 1.0
        %v1233 = vlog2.pop %v1232
        %v1234 = vmul.f32 %v1233, 0.6931472
        %v1235 = vmul.f32 -0.5, %v1168
        %v1236 = vadd.f32 %v1235, 1.0
        %v1237 = vmul.f32 %v1236, %v1168
        %v1238 = vand.u32 2147483647, %v1168
        %vm1239 = vcmp.lt.f32.partialorder %v1238, 0.0004427343
        %v1240 = vsel %vm1239, %v1237, %v1234
        %v1241 = vadd.f32 %v1169, 1.0
        %v1242 = vlog2.pop %v1241
        %v1243 = vmul.f32 %v1242, 0.6931472
        %v1244 = vmul.f32 -0.5, %v1169
        %v1245 = vadd.f32 %v1244, 1.0
        %v1246 = vmul.f32 %v1245, %v1169
        %v1247 = vand.u32 2147483647, %v1169
        %vm1248 = vcmp.lt.f32.partialorder %v1247, 0.0004427343
        %v1249 = vsel %vm1248, %v1246, %v1243
        %v1250 = vadd.f32 %v1170, 1.0
        %v1251 = vlog2.pop %v1250
        %v1252 = vmul.f32 %v1251, 0.6931472
        %v1253 = vmul.f32 -0.5, %v1170
        %v1254 = vadd.f32 %v1253, 1.0
        %v1255 = vmul.f32 %v1254, %v1170
        %v1256 = vand.u32 2147483647, %v1170
        %vm1257 = vcmp.lt.f32.partialorder %v1256, 0.0004427343
        %v1258 = vsel %vm1257, %v1255, %v1252
        %v1259 = vadd.f32 %v1171, 1.0
        %v1260 = vlog2.pop %v1259
        %v1261 = vmul.f32 %v1260, 0.6931472
        %v1262 = vmul.f32 -0.5, %v1171
        %v1263 = vadd.f32 %v1262, 1.0
        %v1264 = vmul.f32 %v1263, %v1171
        %v1265 = vand.u32 2147483647, %v1171
        %vm1266 = vcmp.lt.f32.partialorder %v1265, 0.0004427343
        %v1267 = vsel %vm1266, %v1264, %v1261
        %v1268 = vadd.f32 %v1172, 1.0
        %v1269 = vlog2.pop %v1268
        %v1270 = vmul.f32 %v1269, 0.6931472
        %v1271 = vmul.f32 -0.5, %v1172
        %v1272 = vadd.f32 %v1271, 1.0
        %v1273 = vmul.f32 %v1272, %v1172
        %v1274 = vand.u32 2147483647, %v1172
        %vm1275 = vcmp.lt.f32.partialorder %v1274, 0.0004427343
        %v1276 = vsel %vm1275, %v1273, %v1270
        %v1277 = vadd.f32 %v1173, 1.0
        %v1278 = vlog2.pop %v1277
        %v1279 = vmul.f32 %v1278, 0.6931472
        %v1280 = vmul.f32 -0.5, %v1173
        %v1281 = vadd.f32 %v1280, 1.0
        %v1282 = vmul.f32 %v1281, %v1173
        %v1283 = vand.u32 2147483647, %v1173
        %vm1284 = vcmp.lt.f32.partialorder %v1283, 0.0004427343
        %v1285 = vsel %vm1284, %v1282, %v1279
        %v1286 = vadd.f32 %v1174, 1.0
        %v1287 = vlog2.pop %v1286
        %v1288 = vmul.f32 %v1287, 0.6931472
        %v1289 = vmul.f32 -0.5, %v1174
        %v1290 = vadd.f32 %v1289, 1.0
        %v1291 = vmul.f32 %v1290, %v1174
        %v1292 = vand.u32 2147483647, %v1174
        %vm1293 = vcmp.lt.f32.partialorder %v1292, 0.0004427343
        %v1294 = vsel %vm1293, %v1291, %v1288
        %v1295 = vadd.f32 %v1175, 1.0
        %v1296 = vlog2.pop %v1295
        %v1297 = vmul.f32 %v1296, 0.6931472
        %v1298 = vmul.f32 -0.5, %v1175
        %v1299 = vadd.f32 %v1298, 1.0
        %v1300 = vmul.f32 %v1299, %v1175
        %v1301 = vand.u32 2147483647, %v1175
        %vm1302 = vcmp.lt.f32.partialorder %v1301, 0.0004427343
        %v1303 = vsel %vm1302, %v1300, %v1297
        %v1304 = vadd.f32 %v1176, 1.0
        %v1305 = vlog2.pop %v1304
        %v1306 = vmul.f32 %v1305, 0.6931472
        %v1307 = vmul.f32 -0.5, %v1176
        %v1308 = vadd.f32 %v1307, 1.0
        %v1309 = vmul.f32 %v1308, %v1176
        %v1310 = vand.u32 2147483647, %v1176
        %vm1311 = vcmp.lt.f32.partialorder %v1310, 0.0004427343
        %v1312 = vsel %vm1311, %v1309, %v1306
        %v1313 = vadd.f32 %v1177, 1.0
        %v1314 = vlog2.pop %v1313
        %v1315 = vmul.f32 %v1314, 0.6931472
        %v1316 = vmul.f32 -0.5, %v1177
        %v1317 = vadd.f32 %v1316, 1.0
        %v1318 = vmul.f32 %v1317, %v1177
        %v1319 = vand.u32 2147483647, %v1177
        %vm1320 = vcmp.lt.f32.partialorder %v1319, 0.0004427343
        %v1321 = vsel %vm1320, %v1318, %v1315
        %v1322 = vsub.f32 0.0, %v1162
        %v1323 = vsub.f32 0.0, %v1163
        %v1324 = vsub.f32 0.0, %v1164
        %v1325 = vsub.f32 0.0, %v1165
        %v1326 = vsub.f32 0.0, %v1166
        %v1327 = vsub.f32 0.0, %v1167
        %v1328 = vsub.f32 0.0, %v1168
        %v1329 = vsub.f32 0.0, %v1169
        %v1330 = vsub.f32 0.0, %v1170
        %v1331 = vsub.f32 0.0, %v1171
        %v1332 = vsub.f32 0.0, %v1172
        %v1333 = vsub.f32 0.0, %v1173
        %v1334 = vsub.f32 0.0, %v1174
        %v1335 = vsub.f32 0.0, %v1175
        %v1336 = vsub.f32 0.0, %v1176
        %v1337 = vsub.f32 0.0, %v1177
        %v1338 = vadd.f32 %v1322, 1.0
        %v1339 = vlog2.pop %v1338
        %v1340 = vmul.f32 %v1339, 0.6931472
        %v1341 = vmul.f32 -0.5, %v1322
        %v1342 = vadd.f32 %v1341, 1.0
        %v1343 = vmul.f32 %v1342, %v1322
        %v1344 = vand.u32 2147483647, %v1322
        %vm1345 = vcmp.lt.f32.partialorder %v1344, 0.0004427343
        %v1346 = vsel %vm1345, %v1343, %v1340
        %v1347 = vadd.f32 %v1323, 1.0
        %v1348 = vlog2.pop %v1347
        %v1349 = vmul.f32 %v1348, 0.6931472
        %v1350 = vmul.f32 -0.5, %v1323
        %v1351 = vadd.f32 %v1350, 1.0
        %v1352 = vmul.f32 %v1351, %v1323
        %v1353 = vand.u32 2147483647, %v1323
        %vm1354 = vcmp.lt.f32.partialorder %v1353, 0.0004427343
        %v1355 = vsel %vm1354, %v1352, %v1349
        %v1356 = vadd.f32 %v1324, 1.0
        %v1357 = vlog2.pop %v1356
        %v1358 = vmul.f32 %v1357, 0.6931472
        %v1359 = vmul.f32 -0.5, %v1324
        %v1360 = vadd.f32 %v1359, 1.0
        %v1361 = vmul.f32 %v1360, %v1324
        %v1362 = vand.u32 2147483647, %v1324
        %vm1363 = vcmp.lt.f32.partialorder %v1362, 0.0004427343
        %v1364 = vsel %vm1363, %v1361, %v1358
        %v1365 = vadd.f32 %v1325, 1.0
        %v1366 = vlog2.pop %v1365
        %v1367 = vmul.f32 %v1366, 0.6931472
        %v1368 = vmul.f32 -0.5, %v1325
        %v1369 = vadd.f32 %v1368, 1.0
        %v1370 = vmul.f32 %v1369, %v1325
        %v1371 = vand.u32 2147483647, %v1325
        %vm1372 = vcmp.lt.f32.partialorder %v1371, 0.0004427343
        %v1373 = vsel %vm1372, %v1370, %v1367
        %v1374 = vadd.f32 %v1326, 1.0
        %v1375 = vlog2.pop %v1374
        %v1376 = vmul.f32 %v1375, 0.6931472
        %v1377 = vmul.f32 -0.5, %v1326
        %v1378 = vadd.f32 %v1377, 1.0
        %v1379 = vmul.f32 %v1378, %v1326
        %v1380 = vand.u32 2147483647, %v1326
        %vm1381 = vcmp.lt.f32.partialorder %v1380, 0.0004427343
        %v1382 = vsel %vm1381, %v1379, %v1376
        %v1383 = vadd.f32 %v1327, 1.0
        %v1384 = vlog2.pop %v1383
        %v1385 = vmul.f32 %v1384, 0.6931472
        %v1386 = vmul.f32 -0.5, %v1327
        %v1387 = vadd.f32 %v1386, 1.0
        %v1388 = vmul.f32 %v1387, %v1327
        %v1389 = vand.u32 2147483647, %v1327
        %vm1390 = vcmp.lt.f32.partialorder %v1389, 0.0004427343
        %v1391 = vsel %vm1390, %v1388, %v1385
        %v1392 = vadd.f32 %v1328, 1.0
        %v1393 = vlog2.pop %v1392
        %v1394 = vmul.f32 %v1393, 0.6931472
        %v1395 = vmul.f32 -0.5, %v1328
        %v1396 = vadd.f32 %v1395, 1.0
        %v1397 = vmul.f32 %v1396, %v1328
        %v1398 = vand.u32 2147483647, %v1328
        %vm1399 = vcmp.lt.f32.partialorder %v1398, 0.0004427343
        %v1400 = vsel %vm1399, %v1397, %v1394
        %v1401 = vadd.f32 %v1329, 1.0
        %v1402 = vlog2.pop %v1401
        %v1403 = vmul.f32 %v1402, 0.6931472
        %v1404 = vmul.f32 -0.5, %v1329
        %v1405 = vadd.f32 %v1404, 1.0
        %v1406 = vmul.f32 %v1405, %v1329
        %v1407 = vand.u32 2147483647, %v1329
        %vm1408 = vcmp.lt.f32.partialorder %v1407, 0.0004427343
        %v1409 = vsel %vm1408, %v1406, %v1403
        %v1410 = vadd.f32 %v1330, 1.0
        %v1411 = vlog2.pop %v1410
        %v1412 = vmul.f32 %v1411, 0.6931472
        %v1413 = vmul.f32 -0.5, %v1330
        %v1414 = vadd.f32 %v1413, 1.0
        %v1415 = vmul.f32 %v1414, %v1330
        %v1416 = vand.u32 2147483647, %v1330
        %vm1417 = vcmp.lt.f32.partialorder %v1416, 0.0004427343
        %v1418 = vsel %vm1417, %v1415, %v1412
        %v1419 = vadd.f32 %v1331, 1.0
        %v1420 = vlog2.pop %v1419
        %v1421 = vmul.f32 %v1420, 0.6931472
        %v1422 = vmul.f32 -0.5, %v1331
        %v1423 = vadd.f32 %v1422, 1.0
        %v1424 = vmul.f32 %v1423, %v1331
        %v1425 = vand.u32 2147483647, %v1331
        %vm1426 = vcmp.lt.f32.partialorder %v1425, 0.0004427343
        %v1427 = vsel %vm1426, %v1424, %v1421
        %v1428 = vadd.f32 %v1332, 1.0
        %v1429 = vlog2.pop %v1428
        %v1430 = vmul.f32 %v1429, 0.6931472
        %v1431 = vmul.f32 -0.5, %v1332
        %v1432 = vadd.f32 %v1431, 1.0
        %v1433 = vmul.f32 %v1432, %v1332
        %v1434 = vand.u32 2147483647, %v1332
        %vm1435 = vcmp.lt.f32.partialorder %v1434, 0.0004427343
        %v1436 = vsel %vm1435, %v1433, %v1430
        %v1437 = vadd.f32 %v1333, 1.0
        %v1438 = vlog2.pop %v1437
        %v1439 = vmul.f32 %v1438, 0.6931472
        %v1440 = vmul.f32 -0.5, %v1333
        %v1441 = vadd.f32 %v1440, 1.0
        %v1442 = vmul.f32 %v1441, %v1333
        %v1443 = vand.u32 2147483647, %v1333
        %vm1444 = vcmp.lt.f32.partialorder %v1443, 0.0004427343
        %v1445 = vsel %vm1444, %v1442, %v1439
        %v1446 = vadd.f32 %v1334, 1.0
        %v1447 = vlog2.pop %v1446
        %v1448 = vmul.f32 %v1447, 0.6931472
        %v1449 = vmul.f32 -0.5, %v1334
        %v1450 = vadd.f32 %v1449, 1.0
        %v1451 = vmul.f32 %v1450, %v1334
        %v1452 = vand.u32 2147483647, %v1334
        %vm1453 = vcmp.lt.f32.partialorder %v1452, 0.0004427343
        %v1454 = vsel %vm1453, %v1451, %v1448
        %v1455 = vadd.f32 %v1335, 1.0
        %v1456 = vlog2.pop %v1455
        %v1457 = vmul.f32 %v1456, 0.6931472
        %v1458 = vmul.f32 -0.5, %v1335
        %v1459 = vadd.f32 %v1458, 1.0
        %v1460 = vmul.f32 %v1459, %v1335
        %v1461 = vand.u32 2147483647, %v1335
        %vm1462 = vcmp.lt.f32.partialorder %v1461, 0.0004427343
        %v1463 = vsel %vm1462, %v1460, %v1457
        %v1464 = vadd.f32 %v1336, 1.0
        %v1465 = vlog2.pop %v1464
        %v1466 = vmul.f32 %v1465, 0.6931472
        %v1467 = vmul.f32 -0.5, %v1336
        %v1468 = vadd.f32 %v1467, 1.0
        %v1469 = vmul.f32 %v1468, %v1336
        %v1470 = vand.u32 2147483647, %v1336
        %vm1471 = vcmp.lt.f32.partialorder %v1470, 0.0004427343
        %v1472 = vsel %vm1471, %v1469, %v1466
        %v1473 = vadd.f32 %v1337, 1.0
        %v1474 = vlog2.pop %v1473
        %v1475 = vmul.f32 %v1474, 0.6931472
        %v1476 = vmul.f32 -0.5, %v1337
        %v1477 = vadd.f32 %v1476, 1.0
        %v1478 = vmul.f32 %v1477, %v1337
        %v1479 = vand.u32 2147483647, %v1337
        %vm1480 = vcmp.lt.f32.partialorder %v1479, 0.0004427343
        %v1481 = vsel %vm1480, %v1478, %v1475
        %v1482 = vsub.f32 %v1186, %v1346
        %v1483 = vsub.f32 %v1195, %v1355
        %v1484 = vsub.f32 %v1204, %v1364
        %v1485 = vsub.f32 %v1213, %v1373
        %v1486 = vsub.f32 %v1222, %v1382
        %v1487 = vsub.f32 %v1231, %v1391
        %v1488 = vsub.f32 %v1240, %v1400
        %v1489 = vsub.f32 %v1249, %v1409
        %v1490 = vsub.f32 %v1258, %v1418
        %v1491 = vsub.f32 %v1267, %v1427
        %v1492 = vsub.f32 %v1276, %v1436
        %v1493 = vsub.f32 %v1285, %v1445
        %v1494 = vsub.f32 %v1294, %v1454
        %v1495 = vsub.f32 %v1303, %v1463
        %v1496 = vsub.f32 %v1312, %v1472
        %v1497 = vsub.f32 %v1321, %v1481
        %v1498 = vmul.f32 %v1482, 0.5
        %v1499 = vmul.f32 %v1483, 0.5
        %v1500 = vmul.f32 %v1484, 0.5
        %v1501 = vmul.f32 %v1485, 0.5
        %v1502 = vmul.f32 %v1486, 0.5
        %v1503 = vmul.f32 %v1487, 0.5
        %v1504 = vmul.f32 %v1488, 0.5
        %v1505 = vmul.f32 %v1489, 0.5
        %v1506 = vmul.f32 %v1490, 0.5
        %v1507 = vmul.f32 %v1491, 0.5
        %v1508 = vmul.f32 %v1492, 0.5
        %v1509 = vmul.f32 %v1493, 0.5
        %v1510 = vmul.f32 %v1494, 0.5
        %v1511 = vmul.f32 %v1495, 0.5
        %v1512 = vmul.f32 %v1496, 0.5
        %v1513 = vmul.f32 %v1497, 0.5
        %v1514 = vmul.f32 %v1498, 2.0
        %v1515 = vmul.f32 %v1499, 2.0
        %v1516 = vmul.f32 %v1500, 2.0
        %v1517 = vmul.f32 %v1501, 2.0
        %v1518 = vmul.f32 %v1502, 2.0
        %v1519 = vmul.f32 %v1503, 2.0
        %v1520 = vmul.f32 %v1504, 2.0
        %v1521 = vmul.f32 %v1505, 2.0
        %v1522 = vmul.f32 %v1506, 2.0
        %v1523 = vmul.f32 %v1507, 2.0
        %v1524 = vmul.f32 %v1508, 2.0
        %v1525 = vmul.f32 %v1509, 2.0
        %v1526 = vmul.f32 %v1510, 2.0
        %v1527 = vmul.f32 %v1511, 2.0
        %v1528 = vmul.f32 %v1512, 2.0
        %v1529 = vmul.f32 %v1513, 2.0
        %v1530 = vstv %s265
        %v1531 = vmul.f32 %v1514, %v1530
        %v1532 = vmul.f32 %v1515, %v1530
        %v1533 = vmul.f32 %v1516, %v1530
        %v1534 = vmul.f32 %v1517, %v1530
        %v1535 = vmul.f32 %v1518, %v1530
        %v1536 = vmul.f32 %v1519, %v1530
        %v1537 = vmul.f32 %v1520, %v1530
        %v1538 = vmul.f32 %v1521, %v1530
        %v1539 = vmul.f32 %v1522, %v1530
        %v1540 = vmul.f32 %v1523, %v1530
        %v1541 = vmul.f32 %v1524, %v1530
        %v1542 = vmul.f32 %v1525, %v1530
        %v1543 = vmul.f32 %v1526, %v1530
        %v1544 = vmul.f32 %v1527, %v1530
        %v1545 = vmul.f32 %v1528, %v1530
        %v1546 = vmul.f32 %v1529, %v1530
        %v1547 = vmax.f32 %v666, 1e-05
        %v1548 = vmax.f32 %v667, 1e-05
        %v1549 = vmax.f32 %v668, 1e-05
        %v1550 = vmax.f32 %v669, 1e-05
        %v1551 = vmax.f32 %v670, 1e-05
        %v1552 = vmax.f32 %v671, 1e-05
        %v1553 = vmax.f32 %v672, 1e-05
        %v1554 = vmax.f32 %v673, 1e-05
        %v1555 = vmax.f32 %v674, 1e-05
        %v1556 = vmax.f32 %v675, 1e-05
        %v1557 = vmax.f32 %v676, 1e-05
        %v1558 = vmax.f32 %v677, 1e-05
        %v1559 = vmax.f32 %v678, 1e-05
        %v1560 = vmax.f32 %v679, 1e-05
        %v1561 = vmax.f32 %v680, 1e-05
        %v1562 = vmax.f32 %v681, 1e-05
        %v1563 = vmax.f32 %v1547, -0.99999
        %v1564 = vmax.f32 %v1548, -0.99999
        %v1565 = vmax.f32 %v1549, -0.99999
        %v1566 = vmax.f32 %v1550, -0.99999
        %v1567 = vmax.f32 %v1551, -0.99999
        %v1568 = vmax.f32 %v1552, -0.99999
        %v1569 = vmax.f32 %v1553, -0.99999
        %v1570 = vmax.f32 %v1554, -0.99999
        %v1571 = vmax.f32 %v1555, -0.99999
        %v1572 = vmax.f32 %v1556, -0.99999
        %v1573 = vmax.f32 %v1557, -0.99999
        %v1574 = vmax.f32 %v1558, -0.99999
        %v1575 = vmax.f32 %v1559, -0.99999
        %v1576 = vmax.f32 %v1560, -0.99999
        %v1577 = vmax.f32 %v1561, -0.99999
        %v1578 = vmax.f32 %v1562, -0.99999
        %v1579 = vmin.f32 %v1563, 0.99999
        %v1580 = vmin.f32 %v1564, 0.99999
        %v1581 = vmin.f32 %v1565, 0.99999
        %v1582 = vmin.f32 %v1566, 0.99999
        %v1583 = vmin.f32 %v1567, 0.99999
        %v1584 = vmin.f32 %v1568, 0.99999
        %v1585 = vmin.f32 %v1569, 0.99999
        %v1586 = vmin.f32 %v1570, 0.99999
        %v1587 = vmin.f32 %v1571, 0.99999
        %v1588 = vmin.f32 %v1572, 0.99999
        %v1589 = vmin.f32 %v1573, 0.99999
        %v1590 = vmin.f32 %v1574, 0.99999
        %v1591 = vmin.f32 %v1575, 0.99999
        %v1592 = vmin.f32 %v1576, 0.99999
        %v1593 = vmin.f32 %v1577, 0.99999
        %v1594 = vmin.f32 %v1578, 0.99999
        %v1595 = vadd.f32 %v1579, 1.0
        %v1596 = vlog2.pop %v1595
        %v1597 = vmul.f32 %v1596, 0.6931472
        %v1598 = vmul.f32 -0.5, %v1579
        %v1599 = vadd.f32 %v1598, 1.0
        %v1600 = vmul.f32 %v1599, %v1579
        %v1601 = vand.u32 2147483647, %v1579
        %vm1602 = vcmp.lt.f32.partialorder %v1601, 0.0004427343
        %v1603 = vsel %vm1602, %v1600, %v1597
        %v1604 = vadd.f32 %v1580, 1.0
        %v1605 = vlog2.pop %v1604
        %v1606 = vmul.f32 %v1605, 0.6931472
        %v1607 = vmul.f32 -0.5, %v1580
        %v1608 = vadd.f32 %v1607, 1.0
        %v1609 = vmul.f32 %v1608, %v1580
        %v1610 = vand.u32 2147483647, %v1580
        %vm1611 = vcmp.lt.f32.partialorder %v1610, 0.0004427343
        %v1612 = vsel %vm1611, %v1609, %v1606
        %v1613 = vadd.f32 %v1581, 1.0
        %v1614 = vlog2.pop %v1613
        %v1615 = vmul.f32 %v1614, 0.6931472
        %v1616 = vmul.f32 -0.5, %v1581
        %v1617 = vadd.f32 %v1616, 1.0
        %v1618 = vmul.f32 %v1617, %v1581
        %v1619 = vand.u32 2147483647, %v1581
        %vm1620 = vcmp.lt.f32.partialorder %v1619, 0.0004427343
        %v1621 = vsel %vm1620, %v1618, %v1615
        %v1622 = vadd.f32 %v1582, 1.0
        %v1623 = vlog2.pop %v1622
        %v1624 = vmul.f32 %v1623, 0.6931472
        %v1625 = vmul.f32 -0.5, %v1582
        %v1626 = vadd.f32 %v1625, 1.0
        %v1627 = vmul.f32 %v1626, %v1582
        %v1628 = vand.u32 2147483647, %v1582
        %vm1629 = vcmp.lt.f32.partialorder %v1628, 0.0004427343
        %v1630 = vsel %vm1629, %v1627, %v1624
        %v1631 = vadd.f32 %v1583, 1.0
        %v1632 = vlog2.pop %v1631
        %v1633 = vmul.f32 %v1632, 0.6931472
        %v1634 = vmul.f32 -0.5, %v1583
        %v1635 = vadd.f32 %v1634, 1.0
        %v1636 = vmul.f32 %v1635, %v1583
        %v1637 = vand.u32 2147483647, %v1583
        %vm1638 = vcmp.lt.f32.partialorder %v1637, 0.0004427343
        %v1639 = vsel %vm1638, %v1636, %v1633
        %v1640 = vadd.f32 %v1584, 1.0
        %v1641 = vlog2.pop %v1640
        %v1642 = vmul.f32 %v1641, 0.6931472
        %v1643 = vmul.f32 -0.5, %v1584
        %v1644 = vadd.f32 %v1643, 1.0
        %v1645 = vmul.f32 %v1644, %v1584
        %v1646 = vand.u32 2147483647, %v1584
        %vm1647 = vcmp.lt.f32.partialorder %v1646, 0.0004427343
        %v1648 = vsel %vm1647, %v1645, %v1642
        %v1649 = vadd.f32 %v1585, 1.0
        %v1650 = vlog2.pop %v1649
        %v1651 = vmul.f32 %v1650, 0.6931472
        %v1652 = vmul.f32 -0.5, %v1585
        %v1653 = vadd.f32 %v1652, 1.0
        %v1654 = vmul.f32 %v1653, %v1585
        %v1655 = vand.u32 2147483647, %v1585
        %vm1656 = vcmp.lt.f32.partialorder %v1655, 0.0004427343
        %v1657 = vsel %vm1656, %v1654, %v1651
        %v1658 = vadd.f32 %v1586, 1.0
        %v1659 = vlog2.pop %v1658
        %v1660 = vmul.f32 %v1659, 0.6931472
        %v1661 = vmul.f32 -0.5, %v1586
        %v1662 = vadd.f32 %v1661, 1.0
        %v1663 = vmul.f32 %v1662, %v1586
        %v1664 = vand.u32 2147483647, %v1586
        %vm1665 = vcmp.lt.f32.partialorder %v1664, 0.0004427343
        %v1666 = vsel %vm1665, %v1663, %v1660
        %v1667 = vadd.f32 %v1587, 1.0
        %v1668 = vlog2.pop %v1667
        %v1669 = vmul.f32 %v1668, 0.6931472
        %v1670 = vmul.f32 -0.5, %v1587
        %v1671 = vadd.f32 %v1670, 1.0
        %v1672 = vmul.f32 %v1671, %v1587
        %v1673 = vand.u32 2147483647, %v1587
        %vm1674 = vcmp.lt.f32.partialorder %v1673, 0.0004427343
        %v1675 = vsel %vm1674, %v1672, %v1669
        %v1676 = vadd.f32 %v1588, 1.0
        %v1677 = vlog2.pop %v1676
        %v1678 = vmul.f32 %v1677, 0.6931472
        %v1679 = vmul.f32 -0.5, %v1588
        %v1680 = vadd.f32 %v1679, 1.0
        %v1681 = vmul.f32 %v1680, %v1588
        %v1682 = vand.u32 2147483647, %v1588
        %vm1683 = vcmp.lt.f32.partialorder %v1682, 0.0004427343
        %v1684 = vsel %vm1683, %v1681, %v1678
        %v1685 = vadd.f32 %v1589, 1.0
        %v1686 = vlog2.pop %v1685
        %v1687 = vmul.f32 %v1686, 0.6931472
        %v1688 = vmul.f32 -0.5, %v1589
        %v1689 = vadd.f32 %v1688, 1.0
        %v1690 = vmul.f32 %v1689, %v1589
        %v1691 = vand.u32 2147483647, %v1589
        %vm1692 = vcmp.lt.f32.partialorder %v1691, 0.0004427343
        %v1693 = vsel %vm1692, %v1690, %v1687
        %v1694 = vadd.f32 %v1590, 1.0
        %v1695 = vlog2.pop %v1694
        %v1696 = vmul.f32 %v1695, 0.6931472
        %v1697 = vmul.f32 -0.5, %v1590
        %v1698 = vadd.f32 %v1697, 1.0
        %v1699 = vmul.f32 %v1698, %v1590
        %v1700 = vand.u32 2147483647, %v1590
        %vm1701 = vcmp.lt.f32.partialorder %v1700, 0.0004427343
        %v1702 = vsel %vm1701, %v1699, %v1696
        %v1703 = vadd.f32 %v1591, 1.0
        %v1704 = vlog2.pop %v1703
        %v1705 = vmul.f32 %v1704, 0.6931472
        %v1706 = vmul.f32 -0.5, %v1591
        %v1707 = vadd.f32 %v1706, 1.0
        %v1708 = vmul.f32 %v1707, %v1591
        %v1709 = vand.u32 2147483647, %v1591
        %vm1710 = vcmp.lt.f32.partialorder %v1709, 0.0004427343
        %v1711 = vsel %vm1710, %v1708, %v1705
        %v1712 = vadd.f32 %v1592, 1.0
        %v1713 = vlog2.pop %v1712
        %v1714 = vmul.f32 %v1713, 0.6931472
        %v1715 = vmul.f32 -0.5, %v1592
        %v1716 = vadd.f32 %v1715, 1.0
        %v1717 = vmul.f32 %v1716, %v1592
        %v1718 = vand.u32 2147483647, %v1592
        %vm1719 = vcmp.lt.f32.partialorder %v1718, 0.0004427343
        %v1720 = vsel %vm1719, %v1717, %v1714
        %v1721 = vadd.f32 %v1593, 1.0
        %v1722 = vlog2.pop %v1721
        %v1723 = vmul.f32 %v1722, 0.6931472
        %v1724 = vmul.f32 -0.5, %v1593
        %v1725 = vadd.f32 %v1724, 1.0
        %v1726 = vmul.f32 %v1725, %v1593
        %v1727 = vand.u32 2147483647, %v1593
        %vm1728 = vcmp.lt.f32.partialorder %v1727, 0.0004427343
        %v1729 = vsel %vm1728, %v1726, %v1723
        %v1730 = vadd.f32 %v1594, 1.0
        %v1731 = vlog2.pop %v1730
        %v1732 = vmul.f32 %v1731, 0.6931472
        %v1733 = vmul.f32 -0.5, %v1594
        %v1734 = vadd.f32 %v1733, 1.0
        %v1735 = vmul.f32 %v1734, %v1594
        %v1736 = vand.u32 2147483647, %v1594
        %vm1737 = vcmp.lt.f32.partialorder %v1736, 0.0004427343
        %v1738 = vsel %vm1737, %v1735, %v1732
        %v1739 = vsub.f32 0.0, %v1579
        %v1740 = vsub.f32 0.0, %v1580
        %v1741 = vsub.f32 0.0, %v1581
        %v1742 = vsub.f32 0.0, %v1582
        %v1743 = vsub.f32 0.0, %v1583
        %v1744 = vsub.f32 0.0, %v1584
        %v1745 = vsub.f32 0.0, %v1585
        %v1746 = vsub.f32 0.0, %v1586
        %v1747 = vsub.f32 0.0, %v1587
        %v1748 = vsub.f32 0.0, %v1588
        %v1749 = vsub.f32 0.0, %v1589
        %v1750 = vsub.f32 0.0, %v1590
        %v1751 = vsub.f32 0.0, %v1591
        %v1752 = vsub.f32 0.0, %v1592
        %v1753 = vsub.f32 0.0, %v1593
        %v1754 = vsub.f32 0.0, %v1594
        %v1755 = vadd.f32 %v1739, 1.0
        %v1756 = vlog2.pop %v1755
        %v1757 = vmul.f32 %v1756, 0.6931472
        %v1758 = vmul.f32 -0.5, %v1739
        %v1759 = vadd.f32 %v1758, 1.0
        %v1760 = vmul.f32 %v1759, %v1739
        %v1761 = vand.u32 2147483647, %v1739
        %vm1762 = vcmp.lt.f32.partialorder %v1761, 0.0004427343
        %v1763 = vsel %vm1762, %v1760, %v1757
        %v1764 = vadd.f32 %v1740, 1.0
        %v1765 = vlog2.pop %v1764
        %v1766 = vmul.f32 %v1765, 0.6931472
        %v1767 = vmul.f32 -0.5, %v1740
        %v1768 = vadd.f32 %v1767, 1.0
        %v1769 = vmul.f32 %v1768, %v1740
        %v1770 = vand.u32 2147483647, %v1740
        %vm1771 = vcmp.lt.f32.partialorder %v1770, 0.0004427343
        %v1772 = vsel %vm1771, %v1769, %v1766
        %v1773 = vadd.f32 %v1741, 1.0
        %v1774 = vlog2.pop %v1773
        %v1775 = vmul.f32 %v1774, 0.6931472
        %v1776 = vmul.f32 -0.5, %v1741
        %v1777 = vadd.f32 %v1776, 1.0
        %v1778 = vmul.f32 %v1777, %v1741
        %v1779 = vand.u32 2147483647, %v1741
        %vm1780 = vcmp.lt.f32.partialorder %v1779, 0.0004427343
        %v1781 = vsel %vm1780, %v1778, %v1775
        %v1782 = vadd.f32 %v1742, 1.0
        %v1783 = vlog2.pop %v1782
        %v1784 = vmul.f32 %v1783, 0.6931472
        %v1785 = vmul.f32 -0.5, %v1742
        %v1786 = vadd.f32 %v1785, 1.0
        %v1787 = vmul.f32 %v1786, %v1742
        %v1788 = vand.u32 2147483647, %v1742
        %vm1789 = vcmp.lt.f32.partialorder %v1788, 0.0004427343
        %v1790 = vsel %vm1789, %v1787, %v1784
        %v1791 = vadd.f32 %v1743, 1.0
        %v1792 = vlog2.pop %v1791
        %v1793 = vmul.f32 %v1792, 0.6931472
        %v1794 = vmul.f32 -0.5, %v1743
        %v1795 = vadd.f32 %v1794, 1.0
        %v1796 = vmul.f32 %v1795, %v1743
        %v1797 = vand.u32 2147483647, %v1743
        %vm1798 = vcmp.lt.f32.partialorder %v1797, 0.0004427343
        %v1799 = vsel %vm1798, %v1796, %v1793
        %v1800 = vadd.f32 %v1744, 1.0
        %v1801 = vlog2.pop %v1800
        %v1802 = vmul.f32 %v1801, 0.6931472
        %v1803 = vmul.f32 -0.5, %v1744
        %v1804 = vadd.f32 %v1803, 1.0
        %v1805 = vmul.f32 %v1804, %v1744
        %v1806 = vand.u32 2147483647, %v1744
        %vm1807 = vcmp.lt.f32.partialorder %v1806, 0.0004427343
        %v1808 = vsel %vm1807, %v1805, %v1802
        %v1809 = vadd.f32 %v1745, 1.0
        %v1810 = vlog2.pop %v1809
        %v1811 = vmul.f32 %v1810, 0.6931472
        %v1812 = vmul.f32 -0.5, %v1745
        %v1813 = vadd.f32 %v1812, 1.0
        %v1814 = vmul.f32 %v1813, %v1745
        %v1815 = vand.u32 2147483647, %v1745
        %vm1816 = vcmp.lt.f32.partialorder %v1815, 0.0004427343
        %v1817 = vsel %vm1816, %v1814, %v1811
        %v1818 = vadd.f32 %v1746, 1.0
        %v1819 = vlog2.pop %v1818
        %v1820 = vmul.f32 %v1819, 0.6931472
        %v1821 = vmul.f32 -0.5, %v1746
        %v1822 = vadd.f32 %v1821, 1.0
        %v1823 = vmul.f32 %v1822, %v1746
        %v1824 = vand.u32 2147483647, %v1746
        %vm1825 = vcmp.lt.f32.partialorder %v1824, 0.0004427343
        %v1826 = vsel %vm1825, %v1823, %v1820
        %v1827 = vadd.f32 %v1747, 1.0
        %v1828 = vlog2.pop %v1827
        %v1829 = vmul.f32 %v1828, 0.6931472
        %v1830 = vmul.f32 -0.5, %v1747
        %v1831 = vadd.f32 %v1830, 1.0
        %v1832 = vmul.f32 %v1831, %v1747
        %v1833 = vand.u32 2147483647, %v1747
        %vm1834 = vcmp.lt.f32.partialorder %v1833, 0.0004427343
        %v1835 = vsel %vm1834, %v1832, %v1829
        %v1836 = vadd.f32 %v1748, 1.0
        %v1837 = vlog2.pop %v1836
        %v1838 = vmul.f32 %v1837, 0.6931472
        %v1839 = vmul.f32 -0.5, %v1748
        %v1840 = vadd.f32 %v1839, 1.0
        %v1841 = vmul.f32 %v1840, %v1748
        %v1842 = vand.u32 2147483647, %v1748
        %vm1843 = vcmp.lt.f32.partialorder %v1842, 0.0004427343
        %v1844 = vsel %vm1843, %v1841, %v1838
        %v1845 = vadd.f32 %v1749, 1.0
        %v1846 = vlog2.pop %v1845
        %v1847 = vmul.f32 %v1846, 0.6931472
        %v1848 = vmul.f32 -0.5, %v1749
        %v1849 = vadd.f32 %v1848, 1.0
        %v1850 = vmul.f32 %v1849, %v1749
        %v1851 = vand.u32 2147483647, %v1749
        %vm1852 = vcmp.lt.f32.partialorder %v1851, 0.0004427343
        %v1853 = vsel %vm1852, %v1850, %v1847
        %v1854 = vadd.f32 %v1750, 1.0
        %v1855 = vlog2.pop %v1854
        %v1856 = vmul.f32 %v1855, 0.6931472
        %v1857 = vmul.f32 -0.5, %v1750
        %v1858 = vadd.f32 %v1857, 1.0
        %v1859 = vmul.f32 %v1858, %v1750
        %v1860 = vand.u32 2147483647, %v1750
        %vm1861 = vcmp.lt.f32.partialorder %v1860, 0.0004427343
        %v1862 = vsel %vm1861, %v1859, %v1856
        %v1863 = vadd.f32 %v1751, 1.0
        %v1864 = vlog2.pop %v1863
        %v1865 = vmul.f32 %v1864, 0.6931472
        %v1866 = vmul.f32 -0.5, %v1751
        %v1867 = vadd.f32 %v1866, 1.0
        %v1868 = vmul.f32 %v1867, %v1751
        %v1869 = vand.u32 2147483647, %v1751
        %vm1870 = vcmp.lt.f32.partialorder %v1869, 0.0004427343
        %v1871 = vsel %vm1870, %v1868, %v1865
        %v1872 = vadd.f32 %v1752, 1.0
        %v1873 = vlog2.pop %v1872
        %v1874 = vmul.f32 %v1873, 0.6931472
        %v1875 = vmul.f32 -0.5, %v1752
        %v1876 = vadd.f32 %v1875, 1.0
        %v1877 = vmul.f32 %v1876, %v1752
        %v1878 = vand.u32 2147483647, %v1752
        %vm1879 = vcmp.lt.f32.partialorder %v1878, 0.0004427343
        %v1880 = vsel %vm1879, %v1877, %v1874
        %v1881 = vadd.f32 %v1753, 1.0
        %v1882 = vlog2.pop %v1881
        %v1883 = vmul.f32 %v1882, 0.6931472
        %v1884 = vmul.f32 -0.5, %v1753
        %v1885 = vadd.f32 %v1884, 1.0
        %v1886 = vmul.f32 %v1885, %v1753
        %v1887 = vand.u32 2147483647, %v1753
        %vm1888 = vcmp.lt.f32.partialorder %v1887, 0.0004427343
        %v1889 = vsel %vm1888, %v1886, %v1883
        %v1890 = vadd.f32 %v1754, 1.0
        %v1891 = vlog2.pop %v1890
        %v1892 = vmul.f32 %v1891, 0.6931472
        %v1893 = vmul.f32 -0.5, %v1754
        %v1894 = vadd.f32 %v1893, 1.0
        %v1895 = vmul.f32 %v1894, %v1754
        %v1896 = vand.u32 2147483647, %v1754
        %vm1897 = vcmp.lt.f32.partialorder %v1896, 0.0004427343
        %v1898 = vsel %vm1897, %v1895, %v1892
        %v1899 = vsub.f32 %v1603, %v1763
        %v1900 = vsub.f32 %v1612, %v1772
        %v1901 = vsub.f32 %v1621, %v1781
        %v1902 = vsub.f32 %v1630, %v1790
        %v1903 = vsub.f32 %v1639, %v1799
        %v1904 = vsub.f32 %v1648, %v1808
        %v1905 = vsub.f32 %v1657, %v1817
        %v1906 = vsub.f32 %v1666, %v1826
        %v1907 = vsub.f32 %v1675, %v1835
        %v1908 = vsub.f32 %v1684, %v1844
        %v1909 = vsub.f32 %v1693, %v1853
        %v1910 = vsub.f32 %v1702, %v1862
        %v1911 = vsub.f32 %v1711, %v1871
        %v1912 = vsub.f32 %v1720, %v1880
        %v1913 = vsub.f32 %v1729, %v1889
        %v1914 = vsub.f32 %v1738, %v1898
        %v1915 = vmul.f32 %v1899, 0.5
        %v1916 = vmul.f32 %v1900, 0.5
        %v1917 = vmul.f32 %v1901, 0.5
        %v1918 = vmul.f32 %v1902, 0.5
        %v1919 = vmul.f32 %v1903, 0.5
        %v1920 = vmul.f32 %v1904, 0.5
        %v1921 = vmul.f32 %v1905, 0.5
        %v1922 = vmul.f32 %v1906, 0.5
        %v1923 = vmul.f32 %v1907, 0.5
        %v1924 = vmul.f32 %v1908, 0.5
        %v1925 = vmul.f32 %v1909, 0.5
        %v1926 = vmul.f32 %v1910, 0.5
        %v1927 = vmul.f32 %v1911, 0.5
        %v1928 = vmul.f32 %v1912, 0.5
        %v1929 = vmul.f32 %v1913, 0.5
        %v1930 = vmul.f32 %v1914, 0.5
        %v1931 = vmul.f32 %v1531, %v1915
        %v1932 = vmul.f32 %v1532, %v1916
        %v1933 = vmul.f32 %v1533, %v1917
        %v1934 = vmul.f32 %v1534, %v1918
        %v1935 = vmul.f32 %v1535, %v1919
        %v1936 = vmul.f32 %v1536, %v1920
        %v1937 = vmul.f32 %v1537, %v1921
        %v1938 = vmul.f32 %v1538, %v1922
        %v1939 = vmul.f32 %v1539, %v1923
        %v1940 = vmul.f32 %v1540, %v1924
        %v1941 = vmul.f32 %v1541, %v1925
        %v1942 = vmul.f32 %v1542, %v1926
        %v1943 = vmul.f32 %v1543, %v1927
        %v1944 = vmul.f32 %v1544, %v1928
        %v1945 = vmul.f32 %v1545, %v1929
        %v1946 = vmul.f32 %v1546, %v1930
        %v1947 = vtanh.pop %v1931
        %v1948 = vtanh.pop %v1932
        %v1949 = vtanh.pop %v1933
        %v1950 = vtanh.pop %v1934
        %v1951 = vtanh.pop %v1935
        %v1952 = vtanh.pop %v1936
        %v1953 = vtanh.pop %v1937
        %v1954 = vtanh.pop %v1938
        %v1955 = vtanh.pop %v1939
        %v1956 = vtanh.pop %v1940
        %v1957 = vtanh.pop %v1941
        %v1958 = vtanh.pop %v1942
        %v1959 = vtanh.pop %v1943
        %v1960 = vtanh.pop %v1944
        %v1961 = vtanh.pop %v1945
        %v1962 = vtanh.pop %v1946
        %v1963 = vrcp.pop %v1547
        %v1964 = vmul.f32 %v1947, %v1963
        %v1965 = vrcp.pop %v1548
        %v1966 = vmul.f32 %v1948, %v1965
        %v1967 = vrcp.pop %v1549
        %v1968 = vmul.f32 %v1949, %v1967
        %v1969 = vrcp.pop %v1550
        %v1970 = vmul.f32 %v1950, %v1969
        %v1971 = vrcp.pop %v1551
        %v1972 = vmul.f32 %v1951, %v1971
        %v1973 = vrcp.pop %v1552
        %v1974 = vmul.f32 %v1952, %v1973
        %v1975 = vrcp.pop %v1553
        %v1976 = vmul.f32 %v1953, %v1975
        %v1977 = vrcp.pop %v1554
        %v1978 = vmul.f32 %v1954, %v1977
        %v1979 = vrcp.pop %v1555
        %v1980 = vmul.f32 %v1955, %v1979
        %v1981 = vrcp.pop %v1556
        %v1982 = vmul.f32 %v1956, %v1981
        %v1983 = vrcp.pop %v1557
        %v1984 = vmul.f32 %v1957, %v1983
        %v1985 = vrcp.pop %v1558
        %v1986 = vmul.f32 %v1958, %v1985
        %v1987 = vrcp.pop %v1559
        %v1988 = vmul.f32 %v1959, %v1987
        %v1989 = vrcp.pop %v1560
        %v1990 = vmul.f32 %v1960, %v1989
        %v1991 = vrcp.pop %v1561
        %v1992 = vmul.f32 %v1961, %v1991
        %v1993 = vrcp.pop %v1562
        %v1994 = vmul.f32 %v1962, %v1993
        %v1995 = vmul.f32 %v1964, %v650
        %v1996 = vmul.f32 %v1966, %v651
        %v1997 = vmul.f32 %v1968, %v652
        %v1998 = vmul.f32 %v1970, %v653
        %v1999 = vmul.f32 %v1972, %v654
        %v2000 = vmul.f32 %v1974, %v655
        %v2001 = vmul.f32 %v1976, %v656
        %v2002 = vmul.f32 %v1978, %v657
        %v2003 = vmul.f32 %v1980, %v658
        %v2004 = vmul.f32 %v1982, %v659
        %v2005 = vmul.f32 %v1984, %v660
        %v2006 = vmul.f32 %v1986, %v661
        %v2007 = vmul.f32 %v1988, %v662
        %v2008 = vmul.f32 %v1990, %v663
        %v2009 = vmul.f32 %v1992, %v664
        %v2010 = vmul.f32 %v1994, %v665
        %v2011 = vand.u32 2147483647, %v1964
        %v2012 = vand.u32 2147483647, %v1966
        %v2013 = vand.u32 2147483647, %v1968
        %v2014 = vand.u32 2147483647, %v1970
        %v2015 = vand.u32 2147483647, %v1972
        %v2016 = vand.u32 2147483647, %v1974
        %v2017 = vand.u32 2147483647, %v1976
        %v2018 = vand.u32 2147483647, %v1978
        %v2019 = vand.u32 2147483647, %v1980
        %v2020 = vand.u32 2147483647, %v1982
        %v2021 = vand.u32 2147483647, %v1984
        %v2022 = vand.u32 2147483647, %v1986
        %v2023 = vand.u32 2147483647, %v1988
        %v2024 = vand.u32 2147483647, %v1990
        %v2025 = vand.u32 2147483647, %v1992
        %v2026 = vand.u32 2147483647, %v1994
        %v2027 = vmul.f32 %v2011, %v666
        %v2028 = vmul.f32 %v2012, %v667
        %v2029 = vmul.f32 %v2013, %v668
        %v2030 = vmul.f32 %v2014, %v669
        %v2031 = vmul.f32 %v2015, %v670
        %v2032 = vmul.f32 %v2016, %v671
        %v2033 = vmul.f32 %v2017, %v672
        %v2034 = vmul.f32 %v2018, %v673
        %v2035 = vmul.f32 %v2019, %v674
        %v2036 = vmul.f32 %v2020, %v675
        %v2037 = vmul.f32 %v2021, %v676
        %v2038 = vmul.f32 %v2022, %v677
        %v2039 = vmul.f32 %v2023, %v678
        %v2040 = vmul.f32 %v2024, %v679
        %v2041 = vmul.f32 %v2025, %v680
        %v2042 = vmul.f32 %v2026, %v681
        %v2043 = vmax.f32 %v2027, 1e-05
        %v2044 = vmax.f32 %v2028, 1e-05
        %v2045 = vmax.f32 %v2029, 1e-05
        %v2046 = vmax.f32 %v2030, 1e-05
        %v2047 = vmax.f32 %v2031, 1e-05
        %v2048 = vmax.f32 %v2032, 1e-05
        %v2049 = vmax.f32 %v2033, 1e-05
        %v2050 = vmax.f32 %v2034, 1e-05
        %v2051 = vmax.f32 %v2035, 1e-05
        %v2052 = vmax.f32 %v2036, 1e-05
        %v2053 = vmax.f32 %v2037, 1e-05
        %v2054 = vmax.f32 %v2038, 1e-05
        %v2055 = vmax.f32 %v2039, 1e-05
        %v2056 = vmax.f32 %v2040, 1e-05
        %v2057 = vmax.f32 %v2041, 1e-05
        %v2058 = vmax.f32 %v2042, 1e-05
        %vm2059 = vcmp.gt.f32.partialorder %v2043, 0.999
        %vm2060 = vcmp.gt.f32.partialorder %v2044, 0.999
        %vm2061 = vcmp.gt.f32.partialorder %v2045, 0.999
        %vm2062 = vcmp.gt.f32.partialorder %v2046, 0.999
        %vm2063 = vcmp.gt.f32.partialorder %v2047, 0.999
        %vm2064 = vcmp.gt.f32.partialorder %v2048, 0.999
        %vm2065 = vcmp.gt.f32.partialorder %v2049, 0.999
        %vm2066 = vcmp.gt.f32.partialorder %v2050, 0.999
        %vm2067 = vcmp.gt.f32.partialorder %v2051, 0.999
        %vm2068 = vcmp.gt.f32.partialorder %v2052, 0.999
        %vm2069 = vcmp.gt.f32.partialorder %v2053, 0.999
        %vm2070 = vcmp.gt.f32.partialorder %v2054, 0.999
        %vm2071 = vcmp.gt.f32.partialorder %v2055, 0.999
        %vm2072 = vcmp.gt.f32.partialorder %v2056, 0.999
        %vm2073 = vcmp.gt.f32.partialorder %v2057, 0.999
        %vm2074 = vcmp.gt.f32.partialorder %v2058, 0.999
        %v2075 = vrcp.pop %v2043
        %v2076 = vmul.f32 0.999, %v2075
        %v2077 = vrcp.pop %v2044
        %v2078 = vmul.f32 0.999, %v2077
        %v2079 = vrcp.pop %v2045
        %v2080 = vmul.f32 0.999, %v2079
        %v2081 = vrcp.pop %v2046
        %v2082 = vmul.f32 0.999, %v2081
        %v2083 = vrcp.pop %v2047
        %v2084 = vmul.f32 0.999, %v2083
        %v2085 = vrcp.pop %v2048
        %v2086 = vmul.f32 0.999, %v2085
        %v2087 = vrcp.pop %v2049
        %v2088 = vmul.f32 0.999, %v2087
        %v2089 = vrcp.pop %v2050
        %v2090 = vmul.f32 0.999, %v2089
        %v2091 = vrcp.pop %v2051
        %v2092 = vmul.f32 0.999, %v2091
        %v2093 = vrcp.pop %v2052
        %v2094 = vmul.f32 0.999, %v2093
        %v2095 = vrcp.pop %v2053
        %v2096 = vmul.f32 0.999, %v2095
        %v2097 = vrcp.pop %v2054
        %v2098 = vmul.f32 0.999, %v2097
        %v2099 = vrcp.pop %v2055
        %v2100 = vmul.f32 0.999, %v2099
        %v2101 = vrcp.pop %v2056
        %v2102 = vmul.f32 0.999, %v2101
        %v2103 = vrcp.pop %v2057
        %v2104 = vmul.f32 0.999, %v2103
        %v2105 = vrcp.pop %v2058
        %v2106 = vmul.f32 0.999, %v2105
        %v2107 = vsel %vm2059, %v2076, 1.0
        %v2108 = vsel %vm2060, %v2078, 1.0
        %v2109 = vsel %vm2061, %v2080, 1.0
        %v2110 = vsel %vm2062, %v2082, 1.0
        %v2111 = vsel %vm2063, %v2084, 1.0
        %v2112 = vsel %vm2064, %v2086, 1.0
        %v2113 = vsel %vm2065, %v2088, 1.0
        %v2114 = vsel %vm2066, %v2090, 1.0
        %v2115 = vsel %vm2067, %v2092, 1.0
        %v2116 = vsel %vm2068, %v2094, 1.0
        %v2117 = vsel %vm2069, %v2096, 1.0
        %v2118 = vsel %vm2070, %v2098, 1.0
        %v2119 = vsel %vm2071, %v2100, 1.0
        %v2120 = vsel %vm2072, %v2102, 1.0
        %v2121 = vsel %vm2073, %v2104, 1.0
        %v2122 = vsel %vm2074, %v2106, 1.0
        %v2123 = vmul.f32 %v2107, %v1995
        %v2124 = vmul.f32 %v2108, %v1996
        %v2125 = vmul.f32 %v2109, %v1997
        %v2126 = vmul.f32 %v2110, %v1998
        %v2127 = vmul.f32 %v2111, %v1999
        %v2128 = vmul.f32 %v2112, %v2000
        %v2129 = vmul.f32 %v2113, %v2001
        %v2130 = vmul.f32 %v2114, %v2002
        %v2131 = vmul.f32 %v2115, %v2003
        %v2132 = vmul.f32 %v2116, %v2004
        %v2133 = vmul.f32 %v2117, %v2005
        %v2134 = vmul.f32 %v2118, %v2006
        %v2135 = vmul.f32 %v2119, %v2007
        %v2136 = vmul.f32 %v2120, %v2008
        %v2137 = vmul.f32 %v2121, %v2009
        %v2138 = vmul.f32 %v2122, %v2010
        %v2139 = vmul.f32 %v2107, %v2027
        %v2140 = vmul.f32 %v2108, %v2028
        %v2141 = vmul.f32 %v2109, %v2029
        %v2142 = vmul.f32 %v2110, %v2030
        %v2143 = vmul.f32 %v2111, %v2031
        %v2144 = vmul.f32 %v2112, %v2032
        %v2145 = vmul.f32 %v2113, %v2033
        %v2146 = vmul.f32 %v2114, %v2034
        %v2147 = vmul.f32 %v2115, %v2035
        %v2148 = vmul.f32 %v2116, %v2036
        %v2149 = vmul.f32 %v2117, %v2037
        %v2150 = vmul.f32 %v2118, %v2038
        %v2151 = vmul.f32 %v2119, %v2039
        %v2152 = vmul.f32 %v2120, %v2040
        %v2153 = vmul.f32 %v2121, %v2041
        %v2154 = vmul.f32 %v2122, %v2042
        %v2155 = vmul.f32 %v2139, %v2139
        %v2156 = vmul.f32 %v2140, %v2140
        %v2157 = vmul.f32 %v2141, %v2141
        %v2158 = vmul.f32 %v2142, %v2142
        %v2159 = vmul.f32 %v2143, %v2143
        %v2160 = vmul.f32 %v2144, %v2144
        %v2161 = vmul.f32 %v2145, %v2145
        %v2162 = vmul.f32 %v2146, %v2146
        %v2163 = vmul.f32 %v2147, %v2147
        %v2164 = vmul.f32 %v2148, %v2148
        %v2165 = vmul.f32 %v2149, %v2149
        %v2166 = vmul.f32 %v2150, %v2150
        %v2167 = vmul.f32 %v2151, %v2151
        %v2168 = vmul.f32 %v2152, %v2152
        %v2169 = vmul.f32 %v2153, %v2153
        %v2170 = vmul.f32 %v2154, %v2154
        %v2171 = vmul.f32 %v233, %v2123
        %v2172 = vmul.f32 %v234, %v2124
        %v2173 = vmul.f32 %v235, %v2125
        %v2174 = vmul.f32 %v236, %v2126
        %v2175 = vmul.f32 %v237, %v2127
        %v2176 = vmul.f32 %v238, %v2128
        %v2177 = vmul.f32 %v239, %v2129
        %v2178 = vmul.f32 %v240, %v2130
        %v2179 = vmul.f32 %v241, %v2131
        %v2180 = vmul.f32 %v242, %v2132
        %v2181 = vmul.f32 %v243, %v2133
        %v2182 = vmul.f32 %v244, %v2134
        %v2183 = vmul.f32 %v245, %v2135
        %v2184 = vmul.f32 %v246, %v2136
        %v2185 = vmul.f32 %v247, %v2137
        %v2186 = vmul.f32 %v248, %v2138
        %2187 = vadd.xlane.f32.xlu0 %v2171
        %v2188 = vpop.xlane.xlu0 %2187
        %2189 = vadd.xlane.f32.xlu0 %v2172
        %v2190 = vpop.xlane.xlu0 %2189
        %2191 = vadd.xlane.f32.xlu0 %v2173
        %v2192 = vpop.xlane.xlu0 %2191
        %2193 = vadd.xlane.f32.xlu0 %v2174
        %v2194 = vpop.xlane.xlu0 %2193
        %2195 = vadd.xlane.f32.xlu0 %v2175
        %v2196 = vpop.xlane.xlu0 %2195
        %2197 = vadd.xlane.f32.xlu0 %v2176
        %v2198 = vpop.xlane.xlu0 %2197
        %2199 = vadd.xlane.f32.xlu0 %v2177
        %v2200 = vpop.xlane.xlu0 %2199
        %2201 = vadd.xlane.f32.xlu0 %v2178
        %v2202 = vpop.xlane.xlu0 %2201
        %2203 = vadd.xlane.f32.xlu0 %v2179
        %v2204 = vpop.xlane.xlu0 %2203
        %2205 = vadd.xlane.f32.xlu0 %v2180
        %v2206 = vpop.xlane.xlu0 %2205
        %2207 = vadd.xlane.f32.xlu0 %v2181
        %v2208 = vpop.xlane.xlu0 %2207
        %2209 = vadd.xlane.f32.xlu0 %v2182
        %v2210 = vpop.xlane.xlu0 %2209
        %2211 = vadd.xlane.f32.xlu0 %v2183
        %v2212 = vpop.xlane.xlu0 %2211
        %2213 = vadd.xlane.f32.xlu0 %v2184
        %v2214 = vpop.xlane.xlu0 %2213
        %2215 = vadd.xlane.f32.xlu0 %v2185
        %v2216 = vpop.xlane.xlu0 %2215
        %2217 = vadd.xlane.f32.xlu0 %v2186
        %v2218 = vpop.xlane.xlu0 %2217
        %v2219 = vmul.f32 %v2188, 2.0
        %v2220 = vmul.f32 %v2190, 2.0
        %v2221 = vmul.f32 %v2192, 2.0
        %v2222 = vmul.f32 %v2194, 2.0
        %v2223 = vmul.f32 %v2196, 2.0
        %v2224 = vmul.f32 %v2198, 2.0
        %v2225 = vmul.f32 %v2200, 2.0
        %v2226 = vmul.f32 %v2202, 2.0
        %v2227 = vmul.f32 %v2204, 2.0
        %v2228 = vmul.f32 %v2206, 2.0
        %v2229 = vmul.f32 %v2208, 2.0
        %v2230 = vmul.f32 %v2210, 2.0
        %v2231 = vmul.f32 %v2212, 2.0
        %v2232 = vmul.f32 %v2214, 2.0
        %v2233 = vmul.f32 %v2216, 2.0
        %v2234 = vmul.f32 %v2218, 2.0
        %v2235 = vadd.f32 %v2219, 1.0
        %v2236 = vadd.f32 %v2220, 1.0
        %v2237 = vadd.f32 %v2221, 1.0
        %v2238 = vadd.f32 %v2222, 1.0
        %v2239 = vadd.f32 %v2223, 1.0
        %v2240 = vadd.f32 %v2224, 1.0
        %v2241 = vadd.f32 %v2225, 1.0
        %v2242 = vadd.f32 %v2226, 1.0
        %v2243 = vadd.f32 %v2227, 1.0
        %v2244 = vadd.f32 %v2228, 1.0
        %v2245 = vadd.f32 %v2229, 1.0
        %v2246 = vadd.f32 %v2230, 1.0
        %v2247 = vadd.f32 %v2231, 1.0
        %v2248 = vadd.f32 %v2232, 1.0
        %v2249 = vadd.f32 %v2233, 1.0
        %v2250 = vadd.f32 %v2234, 1.0
        %v2251 = vadd.f32 %v2235, %v2155
        %v2252 = vadd.f32 %v2236, %v2156
        %v2253 = vadd.f32 %v2237, %v2157
        %v2254 = vadd.f32 %v2238, %v2158
        %v2255 = vadd.f32 %v2239, %v2159
        %v2256 = vadd.f32 %v2240, %v2160
        %v2257 = vadd.f32 %v2241, %v2161
        %v2258 = vadd.f32 %v2242, %v2162
        %v2259 = vadd.f32 %v2243, %v2163
        %v2260 = vadd.f32 %v2244, %v2164
        %v2261 = vadd.f32 %v2245, %v2165
        %v2262 = vadd.f32 %v2246, %v2166
        %v2263 = vadd.f32 %v2247, %v2167
        %v2264 = vadd.f32 %v2248, %v2168
        %v2265 = vadd.f32 %v2249, %v2169
        %v2266 = vadd.f32 %v2250, %v2170
        %v2267 = vmul.f32 %v2251, %v233
        %v2268 = vmul.f32 %v2252, %v234
        %v2269 = vmul.f32 %v2253, %v235
        %v2270 = vmul.f32 %v2254, %v236
        %v2271 = vmul.f32 %v2255, %v237
        %v2272 = vmul.f32 %v2256, %v238
        %v2273 = vmul.f32 %v2257, %v239
        %v2274 = vmul.f32 %v2258, %v240
        %v2275 = vmul.f32 %v2259, %v241
        %v2276 = vmul.f32 %v2260, %v242
        %v2277 = vmul.f32 %v2261, %v243
        %v2278 = vmul.f32 %v2262, %v244
        %v2279 = vmul.f32 %v2263, %v245
        %v2280 = vmul.f32 %v2264, %v246
        %v2281 = vmul.f32 %v2265, %v247
        %v2282 = vmul.f32 %v2266, %v248
        %v2283 = vmul.f32 %v842, %v2123
        %v2284 = vmul.f32 %v843, %v2124
        %v2285 = vmul.f32 %v844, %v2125
        %v2286 = vmul.f32 %v845, %v2126
        %v2287 = vmul.f32 %v846, %v2127
        %v2288 = vmul.f32 %v847, %v2128
        %v2289 = vmul.f32 %v848, %v2129
        %v2290 = vmul.f32 %v849, %v2130
        %v2291 = vmul.f32 %v850, %v2131
        %v2292 = vmul.f32 %v851, %v2132
        %v2293 = vmul.f32 %v852, %v2133
        %v2294 = vmul.f32 %v853, %v2134
        %v2295 = vmul.f32 %v854, %v2135
        %v2296 = vmul.f32 %v855, %v2136
        %v2297 = vmul.f32 %v856, %v2137
        %v2298 = vmul.f32 %v857, %v2138
        %v2299 = vadd.f32 %v2267, %v2283
        %v2300 = vadd.f32 %v2268, %v2284
        %v2301 = vadd.f32 %v2269, %v2285
        %v2302 = vadd.f32 %v2270, %v2286
        %v2303 = vadd.f32 %v2271, %v2287
        %v2304 = vadd.f32 %v2272, %v2288
        %v2305 = vadd.f32 %v2273, %v2289
        %v2306 = vadd.f32 %v2274, %v2290
        %v2307 = vadd.f32 %v2275, %v2291
        %v2308 = vadd.f32 %v2276, %v2292
        %v2309 = vadd.f32 %v2277, %v2293
        %v2310 = vadd.f32 %v2278, %v2294
        %v2311 = vadd.f32 %v2279, %v2295
        %v2312 = vadd.f32 %v2280, %v2296
        %v2313 = vadd.f32 %v2281, %v2297
        %v2314 = vadd.f32 %v2282, %v2298
        %v2315 = vmul.f32 %v331, %v2155
        %v2316 = vmul.f32 %v333, %v2156
        %v2317 = vmul.f32 %v335, %v2157
        %v2318 = vmul.f32 %v337, %v2158
        %v2319 = vmul.f32 %v339, %v2159
        %v2320 = vmul.f32 %v341, %v2160
        %v2321 = vmul.f32 %v343, %v2161
        %v2322 = vmul.f32 %v345, %v2162
        %v2323 = vmul.f32 %v347, %v2163
        %v2324 = vmul.f32 %v349, %v2164
        %v2325 = vmul.f32 %v351, %v2165
        %v2326 = vmul.f32 %v353, %v2166
        %v2327 = vmul.f32 %v355, %v2167
        %v2328 = vmul.f32 %v357, %v2168
        %v2329 = vmul.f32 %v359, %v2169
        %v2330 = vmul.f32 %v361, %v2170
        %v2331 = vadd.f32 %v2235, %v2315
        %v2332 = vadd.f32 %v2236, %v2316
        %v2333 = vadd.f32 %v2237, %v2317
        %v2334 = vadd.f32 %v2238, %v2318
        %v2335 = vadd.f32 %v2239, %v2319
        %v2336 = vadd.f32 %v2240, %v2320
        %v2337 = vadd.f32 %v2241, %v2321
        %v2338 = vadd.f32 %v2242, %v2322
        %v2339 = vadd.f32 %v2243, %v2323
        %v2340 = vadd.f32 %v2244, %v2324
        %v2341 = vadd.f32 %v2245, %v2325
        %v2342 = vadd.f32 %v2246, %v2326
        %v2343 = vadd.f32 %v2247, %v2327
        %v2344 = vadd.f32 %v2248, %v2328
        %v2345 = vadd.f32 %v2249, %v2329
        %v2346 = vadd.f32 %v2250, %v2330
        %v2347 = vmax.f32 %v2331, 1e-15
        %v2348 = vmax.f32 %v2332, 1e-15
        %v2349 = vmax.f32 %v2333, 1e-15
        %v2350 = vmax.f32 %v2334, 1e-15
        %v2351 = vmax.f32 %v2335, 1e-15
        %v2352 = vmax.f32 %v2336, 1e-15
        %v2353 = vmax.f32 %v2337, 1e-15
        %v2354 = vmax.f32 %v2338, 1e-15
        %v2355 = vmax.f32 %v2339, 1e-15
        %v2356 = vmax.f32 %v2340, 1e-15
        %v2357 = vmax.f32 %v2341, 1e-15
        %v2358 = vmax.f32 %v2342, 1e-15
        %v2359 = vmax.f32 %v2343, 1e-15
        %v2360 = vmax.f32 %v2344, 1e-15
        %v2361 = vmax.f32 %v2345, 1e-15
        %v2362 = vmax.f32 %v2346, 1e-15
        %v2363 = vrcp.pop %v2347
        %v2364 = vmul.f32 1.0, %v2363
        %v2365 = vrcp.pop %v2348
        %v2366 = vmul.f32 1.0, %v2365
        %v2367 = vrcp.pop %v2349
        %v2368 = vmul.f32 1.0, %v2367
        %v2369 = vrcp.pop %v2350
        %v2370 = vmul.f32 1.0, %v2369
        %v2371 = vrcp.pop %v2351
        %v2372 = vmul.f32 1.0, %v2371
        %v2373 = vrcp.pop %v2352
        %v2374 = vmul.f32 1.0, %v2373
        %v2375 = vrcp.pop %v2353
        %v2376 = vmul.f32 1.0, %v2375
        %v2377 = vrcp.pop %v2354
        %v2378 = vmul.f32 1.0, %v2377
        %v2379 = vrcp.pop %v2355
        %v2380 = vmul.f32 1.0, %v2379
        %v2381 = vrcp.pop %v2356
        %v2382 = vmul.f32 1.0, %v2381
        %v2383 = vrcp.pop %v2357
        %v2384 = vmul.f32 1.0, %v2383
        %v2385 = vrcp.pop %v2358
        %v2386 = vmul.f32 1.0, %v2385
        %v2387 = vrcp.pop %v2359
        %v2388 = vmul.f32 1.0, %v2387
        %v2389 = vrcp.pop %v2360
        %v2390 = vmul.f32 1.0, %v2389
        %v2391 = vrcp.pop %v2361
        %v2392 = vmul.f32 1.0, %v2391
        %v2393 = vrcp.pop %v2362
        %v2394 = vmul.f32 1.0, %v2393
        %v2395 = vmul.f32 %v2299, %v2364
        %v2396 = vmul.f32 %v2300, %v2366
        %v2397 = vmul.f32 %v2301, %v2368
        %v2398 = vmul.f32 %v2302, %v2370
        %v2399 = vmul.f32 %v2303, %v2372
        %v2400 = vmul.f32 %v2304, %v2374
        %v2401 = vmul.f32 %v2305, %v2376
        %v2402 = vmul.f32 %v2306, %v2378
        %v2403 = vmul.f32 %v2307, %v2380
        %v2404 = vmul.f32 %v2308, %v2382
        %v2405 = vmul.f32 %v2309, %v2384
        %v2406 = vmul.f32 %v2310, %v2386
        %v2407 = vmul.f32 %v2311, %v2388
        %v2408 = vmul.f32 %v2312, %v2390
        %v2409 = vmul.f32 %v2313, %v2392
        %v2410 = vmul.f32 %v2314, %v2394
        %v2411 = vmul.f32 %v2395, %v2395
        %v2412 = vmul.f32 %v2396, %v2396
        %v2413 = vmul.f32 %v2397, %v2397
        %v2414 = vmul.f32 %v2398, %v2398
        %v2415 = vmul.f32 %v2399, %v2399
        %v2416 = vmul.f32 %v2400, %v2400
        %v2417 = vmul.f32 %v2401, %v2401
        %v2418 = vmul.f32 %v2402, %v2402
        %v2419 = vmul.f32 %v2403, %v2403
        %v2420 = vmul.f32 %v2404, %v2404
        %v2421 = vmul.f32 %v2405, %v2405
        %v2422 = vmul.f32 %v2406, %v2406
        %v2423 = vmul.f32 %v2407, %v2407
        %v2424 = vmul.f32 %v2408, %v2408
        %v2425 = vmul.f32 %v2409, %v2409
        %v2426 = vmul.f32 %v2410, %v2410
        %2427 = vadd.xlane.f32.xlu0 %v2411
        %v2428 = vpop.xlane.xlu0 %2427
        %2429 = vadd.xlane.f32.xlu0 %v2412
        %v2430 = vpop.xlane.xlu0 %2429
        %2431 = vadd.xlane.f32.xlu0 %v2413
        %v2432 = vpop.xlane.xlu0 %2431
        %2433 = vadd.xlane.f32.xlu0 %v2414
        %v2434 = vpop.xlane.xlu0 %2433
        %2435 = vadd.xlane.f32.xlu0 %v2415
        %v2436 = vpop.xlane.xlu0 %2435
        %2437 = vadd.xlane.f32.xlu0 %v2416
        %v2438 = vpop.xlane.xlu0 %2437
        %2439 = vadd.xlane.f32.xlu0 %v2417
        %v2440 = vpop.xlane.xlu0 %2439
        %2441 = vadd.xlane.f32.xlu0 %v2418
        %v2442 = vpop.xlane.xlu0 %2441
        %2443 = vadd.xlane.f32.xlu0 %v2419
        %v2444 = vpop.xlane.xlu0 %2443
        %2445 = vadd.xlane.f32.xlu0 %v2420
        %v2446 = vpop.xlane.xlu0 %2445
        %2447 = vadd.xlane.f32.xlu0 %v2421
        %v2448 = vpop.xlane.xlu0 %2447
        %2449 = vadd.xlane.f32.xlu0 %v2422
        %v2450 = vpop.xlane.xlu0 %2449
        %2451 = vadd.xlane.f32.xlu0 %v2423
        %v2452 = vpop.xlane.xlu0 %2451
        %2453 = vadd.xlane.f32.xlu0 %v2424
        %v2454 = vpop.xlane.xlu0 %2453
        %2455 = vadd.xlane.f32.xlu0 %v2425
        %v2456 = vpop.xlane.xlu0 %2455
        %2457 = vadd.xlane.f32.xlu0 %v2426
        %v2458 = vpop.xlane.xlu0 %2457
        %v2459 = vrsqrt.pop %v2428
        %v2460 = vmul.f32 %v2428, %v2459
        %vm2461 = vcmp.eq.f32.partialorder %v2428, inf
        %v2462 = vsel %vm2461, %v2428, %v2460
        %vm2463 = vcmp.eq.f32.partialorder %v2428, 0.0
        %v2464 = vand.u32 %v2428, 2147483648
        %v2465 = vsel %vm2463, %v2464, %v2462
        %v2466 = vrsqrt.pop %v2430
        %v2467 = vmul.f32 %v2430, %v2466
        %vm2468 = vcmp.eq.f32.partialorder %v2430, inf
        %v2469 = vsel %vm2468, %v2430, %v2467
        %vm2470 = vcmp.eq.f32.partialorder %v2430, 0.0
        %v2471 = vand.u32 %v2430, 2147483648
        %v2472 = vsel %vm2470, %v2471, %v2469
        %v2473 = vrsqrt.pop %v2432
        %v2474 = vmul.f32 %v2432, %v2473
        %vm2475 = vcmp.eq.f32.partialorder %v2432, inf
        %v2476 = vsel %vm2475, %v2432, %v2474
        %vm2477 = vcmp.eq.f32.partialorder %v2432, 0.0
        %v2478 = vand.u32 %v2432, 2147483648
        %v2479 = vsel %vm2477, %v2478, %v2476
        %v2480 = vrsqrt.pop %v2434
        %v2481 = vmul.f32 %v2434, %v2480
        %vm2482 = vcmp.eq.f32.partialorder %v2434, inf
        %v2483 = vsel %vm2482, %v2434, %v2481
        %vm2484 = vcmp.eq.f32.partialorder %v2434, 0.0
        %v2485 = vand.u32 %v2434, 2147483648
        %v2486 = vsel %vm2484, %v2485, %v2483
        %v2487 = vrsqrt.pop %v2436
        %v2488 = vmul.f32 %v2436, %v2487
        %vm2489 = vcmp.eq.f32.partialorder %v2436, inf
        %v2490 = vsel %vm2489, %v2436, %v2488
        %vm2491 = vcmp.eq.f32.partialorder %v2436, 0.0
        %v2492 = vand.u32 %v2436, 2147483648
        %v2493 = vsel %vm2491, %v2492, %v2490
        %v2494 = vrsqrt.pop %v2438
        %v2495 = vmul.f32 %v2438, %v2494
        %vm2496 = vcmp.eq.f32.partialorder %v2438, inf
        %v2497 = vsel %vm2496, %v2438, %v2495
        %vm2498 = vcmp.eq.f32.partialorder %v2438, 0.0
        %v2499 = vand.u32 %v2438, 2147483648
        %v2500 = vsel %vm2498, %v2499, %v2497
        %v2501 = vrsqrt.pop %v2440
        %v2502 = vmul.f32 %v2440, %v2501
        %vm2503 = vcmp.eq.f32.partialorder %v2440, inf
        %v2504 = vsel %vm2503, %v2440, %v2502
        %vm2505 = vcmp.eq.f32.partialorder %v2440, 0.0
        %v2506 = vand.u32 %v2440, 2147483648
        %v2507 = vsel %vm2505, %v2506, %v2504
        %v2508 = vrsqrt.pop %v2442
        %v2509 = vmul.f32 %v2442, %v2508
        %vm2510 = vcmp.eq.f32.partialorder %v2442, inf
        %v2511 = vsel %vm2510, %v2442, %v2509
        %vm2512 = vcmp.eq.f32.partialorder %v2442, 0.0
        %v2513 = vand.u32 %v2442, 2147483648
        %v2514 = vsel %vm2512, %v2513, %v2511
        %v2515 = vrsqrt.pop %v2444
        %v2516 = vmul.f32 %v2444, %v2515
        %vm2517 = vcmp.eq.f32.partialorder %v2444, inf
        %v2518 = vsel %vm2517, %v2444, %v2516
        %vm2519 = vcmp.eq.f32.partialorder %v2444, 0.0
        %v2520 = vand.u32 %v2444, 2147483648
        %v2521 = vsel %vm2519, %v2520, %v2518
        %v2522 = vrsqrt.pop %v2446
        %v2523 = vmul.f32 %v2446, %v2522
        %vm2524 = vcmp.eq.f32.partialorder %v2446, inf
        %v2525 = vsel %vm2524, %v2446, %v2523
        %vm2526 = vcmp.eq.f32.partialorder %v2446, 0.0
        %v2527 = vand.u32 %v2446, 2147483648
        %v2528 = vsel %vm2526, %v2527, %v2525
        %v2529 = vrsqrt.pop %v2448
        %v2530 = vmul.f32 %v2448, %v2529
        %vm2531 = vcmp.eq.f32.partialorder %v2448, inf
        %v2532 = vsel %vm2531, %v2448, %v2530
        %vm2533 = vcmp.eq.f32.partialorder %v2448, 0.0
        %v2534 = vand.u32 %v2448, 2147483648
        %v2535 = vsel %vm2533, %v2534, %v2532
        %v2536 = vrsqrt.pop %v2450
        %v2537 = vmul.f32 %v2450, %v2536
        %vm2538 = vcmp.eq.f32.partialorder %v2450, inf
        %v2539 = vsel %vm2538, %v2450, %v2537
        %vm2540 = vcmp.eq.f32.partialorder %v2450, 0.0
        %v2541 = vand.u32 %v2450, 2147483648
        %v2542 = vsel %vm2540, %v2541, %v2539
        %v2543 = vrsqrt.pop %v2452
        %v2544 = vmul.f32 %v2452, %v2543
        %vm2545 = vcmp.eq.f32.partialorder %v2452, inf
        %v2546 = vsel %vm2545, %v2452, %v2544
        %vm2547 = vcmp.eq.f32.partialorder %v2452, 0.0
        %v2548 = vand.u32 %v2452, 2147483648
        %v2549 = vsel %vm2547, %v2548, %v2546
        %v2550 = vrsqrt.pop %v2454
        %v2551 = vmul.f32 %v2454, %v2550
        %vm2552 = vcmp.eq.f32.partialorder %v2454, inf
        %v2553 = vsel %vm2552, %v2454, %v2551
        %vm2554 = vcmp.eq.f32.partialorder %v2454, 0.0
        %v2555 = vand.u32 %v2454, 2147483648
        %v2556 = vsel %vm2554, %v2555, %v2553
        %v2557 = vrsqrt.pop %v2456
        %v2558 = vmul.f32 %v2456, %v2557
        %vm2559 = vcmp.eq.f32.partialorder %v2456, inf
        %v2560 = vsel %vm2559, %v2456, %v2558
        %vm2561 = vcmp.eq.f32.partialorder %v2456, 0.0
        %v2562 = vand.u32 %v2456, 2147483648
        %v2563 = vsel %vm2561, %v2562, %v2560
        %v2564 = vrsqrt.pop %v2458
        %v2565 = vmul.f32 %v2458, %v2564
        %vm2566 = vcmp.eq.f32.partialorder %v2458, inf
        %v2567 = vsel %vm2566, %v2458, %v2565
        %vm2568 = vcmp.eq.f32.partialorder %v2458, 0.0
        %v2569 = vand.u32 %v2458, 2147483648
        %v2570 = vsel %vm2568, %v2569, %v2567
        %v2571 = vmax.f32 %v2465, 1e-05
        %v2572 = vmax.f32 %v2472, 1e-05
        %v2573 = vmax.f32 %v2479, 1e-05
        %v2574 = vmax.f32 %v2486, 1e-05
        %v2575 = vmax.f32 %v2493, 1e-05
        %v2576 = vmax.f32 %v2500, 1e-05
        %v2577 = vmax.f32 %v2507, 1e-05
        %v2578 = vmax.f32 %v2514, 1e-05
        %v2579 = vmax.f32 %v2521, 1e-05
        %v2580 = vmax.f32 %v2528, 1e-05
        %v2581 = vmax.f32 %v2535, 1e-05
        %v2582 = vmax.f32 %v2542, 1e-05
        %v2583 = vmax.f32 %v2549, 1e-05
        %v2584 = vmax.f32 %v2556, 1e-05
        %v2585 = vmax.f32 %v2563, 1e-05
        %v2586 = vmax.f32 %v2570, 1e-05
        %vm2587 = vcmp.gt.f32.partialorder %v2571, 0.999
        %vm2588 = vcmp.gt.f32.partialorder %v2572, 0.999
        %vm2589 = vcmp.gt.f32.partialorder %v2573, 0.999
        %vm2590 = vcmp.gt.f32.partialorder %v2574, 0.999
        %vm2591 = vcmp.gt.f32.partialorder %v2575, 0.999
        %vm2592 = vcmp.gt.f32.partialorder %v2576, 0.999
        %vm2593 = vcmp.gt.f32.partialorder %v2577, 0.999
        %vm2594 = vcmp.gt.f32.partialorder %v2578, 0.999
        %vm2595 = vcmp.gt.f32.partialorder %v2579, 0.999
        %vm2596 = vcmp.gt.f32.partialorder %v2580, 0.999
        %vm2597 = vcmp.gt.f32.partialorder %v2581, 0.999
        %vm2598 = vcmp.gt.f32.partialorder %v2582, 0.999
        %vm2599 = vcmp.gt.f32.partialorder %v2583, 0.999
        %vm2600 = vcmp.gt.f32.partialorder %v2584, 0.999
        %vm2601 = vcmp.gt.f32.partialorder %v2585, 0.999
        %vm2602 = vcmp.gt.f32.partialorder %v2586, 0.999
        %v2603 = vrcp.pop %v2571
        %v2604 = vmul.f32 0.999, %v2603
        %v2605 = vrcp.pop %v2572
        %v2606 = vmul.f32 0.999, %v2605
        %v2607 = vrcp.pop %v2573
        %v2608 = vmul.f32 0.999, %v2607
        %v2609 = vrcp.pop %v2574
        %v2610 = vmul.f32 0.999, %v2609
        %v2611 = vrcp.pop %v2575
        %v2612 = vmul.f32 0.999, %v2611
        %v2613 = vrcp.pop %v2576
        %v2614 = vmul.f32 0.999, %v2613
        %v2615 = vrcp.pop %v2577
        %v2616 = vmul.f32 0.999, %v2615
        %v2617 = vrcp.pop %v2578
        %v2618 = vmul.f32 0.999, %v2617
        %v2619 = vrcp.pop %v2579
        %v2620 = vmul.f32 0.999, %v2619
        %v2621 = vrcp.pop %v2580
        %v2622 = vmul.f32 0.999, %v2621
        %v2623 = vrcp.pop %v2581
        %v2624 = vmul.f32 0.999, %v2623
        %v2625 = vrcp.pop %v2582
        %v2626 = vmul.f32 0.999, %v2625
        %v2627 = vrcp.pop %v2583
        %v2628 = vmul.f32 0.999, %v2627
        %v2629 = vrcp.pop %v2584
        %v2630 = vmul.f32 0.999, %v2629
        %v2631 = vrcp.pop %v2585
        %v2632 = vmul.f32 0.999, %v2631
        %v2633 = vrcp.pop %v2586
        %v2634 = vmul.f32 0.999, %v2633
        %v2635 = vsel %vm2587, %v2604, 1.0
        %v2636 = vsel %vm2588, %v2606, 1.0
        %v2637 = vsel %vm2589, %v2608, 1.0
        %v2638 = vsel %vm2590, %v2610, 1.0
        %v2639 = vsel %vm2591, %v2612, 1.0
        %v2640 = vsel %vm2592, %v2614, 1.0
        %v2641 = vsel %vm2593, %v2616, 1.0
        %v2642 = vsel %vm2594, %v2618, 1.0
        %v2643 = vsel %vm2595, %v2620, 1.0
        %v2644 = vsel %vm2596, %v2622, 1.0
        %v2645 = vsel %vm2597, %v2624, 1.0
        %v2646 = vsel %vm2598, %v2626, 1.0
        %v2647 = vsel %vm2599, %v2628, 1.0
        %v2648 = vsel %vm2600, %v2630, 1.0
        %v2649 = vsel %vm2601, %v2632, 1.0
        %v2650 = vsel %vm2602, %v2634, 1.0
        %v2651 = vmul.f32 %v2635, %v2395
        %v2652 = vmul.f32 %v2636, %v2396
        %v2653 = vmul.f32 %v2637, %v2397
        %v2654 = vmul.f32 %v2638, %v2398
        %v2655 = vmul.f32 %v2639, %v2399
        %v2656 = vmul.f32 %v2640, %v2400
        %v2657 = vmul.f32 %v2641, %v2401
        %v2658 = vmul.f32 %v2642, %v2402
        %v2659 = vmul.f32 %v2643, %v2403
        %v2660 = vmul.f32 %v2644, %v2404
        %v2661 = vmul.f32 %v2645, %v2405
        %v2662 = vmul.f32 %v2646, %v2406
        %v2663 = vmul.f32 %v2647, %v2407
        %v2664 = vmul.f32 %v2648, %v2408
        %v2665 = vmul.f32 %v2649, %v2409
        %v2666 = vmul.f32 %v2650, %v2410
        %2667 = vst [vmem:[%s229] sm:$0xff] %v2651
        %2668 = vst [vmem:[%s229 + $0x8] sm:$0xff] %v2652
        %2669 = vst [vmem:[%s229 + $0x10] sm:$0xff] %v2653
        %2670 = vst [vmem:[%s229 + $0x18] sm:$0xff] %v2654
        %2671 = vst [vmem:[%s229 + $0x20] sm:$0xff] %v2655
        %2672 = vst [vmem:[%s229 + $0x28] sm:$0xff] %v2656
        %2673 = vst [vmem:[%s229 + $0x30] sm:$0xff] %v2657
        %2674 = vst [vmem:[%s229 + $0x38] sm:$0xff] %v2658
        %2675 = vst [vmem:[%s229 + $0x40] sm:$0xff] %v2659
        %2676 = vst [vmem:[%s229 + $0x48] sm:$0xff] %v2660
        %2677 = vst [vmem:[%s229 + $0x50] sm:$0xff] %v2661
        %2678 = vst [vmem:[%s229 + $0x58] sm:$0xff] %v2662
        %2679 = vst [vmem:[%s229 + $0x60] sm:$0xff] %v2663
        %2680 = vst [vmem:[%s229 + $0x68] sm:$0xff] %v2664
        %2681 = vst [vmem:[%s229 + $0x70] sm:$0xff] %v2665
        %2682 = vst [vmem:[%s229 + $0x78] sm:$0xff] %v2666
        %s2683 = sand.u32 %s105, 1
        %s2684 = scalar_lea.sflag [#allocation5], %s2683
        %s2685 = sand.u32 %s105, 1
        %s2686 = smul.addr %s2685, 128
        %s2687 = scalar_lea.vmem [#allocation8], %s2686
        // Predicated region
        $region41: #{tpu_custom_call.1} parent=31 // pred_check
          %p2688 = pneg %p115
        $region42: #{tpu_custom_call.1} parent=31 // pred_check_branch
          %2690 = sbr.rel (%p2688) target = $region44
        $region43: #{tpu_custom_call.1} parent=31 // pred_region
          %s2691 = smul.u32 16, %s24
          %s2693 = ssub.s32 2048, 2048
          %2694 = vsyncadd %s2684, %s2693
          %s2695 = smul.addr %s2691, 128
          %s2696 = scalar_lea.hbm %s3, %s2695
          %s2697 = sshll.u32 %s2687, 4
          %s2698 = int_to_ptr.vmem [resolvable:$true] %s2697
          %2703 = dma.vmem_to_hbm [thread:$0]  %s2698, 2048, %s2696, %s2684, 128, 128, 8
        $region44: #{tpu_custom_call.1} parent=31 // pred_fallthru
          _
      $region32: #{tpu_custom_call.1} parent=5 // pred_fallthru
        _
      %p2704 = scmp.le.s32.totalorder 2, %s19
      // Predicated region
      $region45: #{tpu_custom_call.1} parent=5 // pred_check
        %p2705 = pneg %p2704
      $region46: #{tpu_custom_call.1} parent=5 // pred_check_branch
        %2707 = sbr.rel (%p2705) target = $region48
      $region47: #{tpu_custom_call.1} parent=5 // pred_region
        %s2708 = ssub.s32 %s19, 2
        // Predicated region
        $region49: #{tpu_custom_call.1} parent=47 // pred_check
          %p2709 = pneg %p121
        $region50: #{tpu_custom_call.1} parent=47 // pred_check_branch
          %2711 = sbr.rel (%p2709) target = $region52
        $region51: #{tpu_custom_call.1} parent=47 // pred_region
          %s2712 = sand.u32 %s106, 1
          %s2713 = scalar_lea.sflag [#allocation5], %s2712
          %s2714 = sand.u32 %s106, 1
          %s2715 = smul.addr %s2714, 128
          %s2716 = scalar_lea.vmem [#allocation8], %s2715
          %2717 = dma.done %s2713, 2048
        $region52: #{tpu_custom_call.1} parent=47 // pred_fallthru
          _
      $region48: #{tpu_custom_call.1} parent=5 // pred_fallthru
        _
    $region6: #{tpu_custom_call.1} parent=1 // loop_footer
      %s23 = sadd.s32 1, %s19
    $region7: #{tpu_custom_call.1} parent=1 // loop_footer_branch
      %18 = sbr.rel target = $region3
    $region8: #{tpu_custom_call.1} parent=1 // loop_exit
      _
    %2718 = vsyncpa [#allocation4], 1
    %s2719 = scalar_lea.sflag [#allocation4], 1
    %2720 = vsyncpa %s2719, 1
    %2721 = vsyncpa [#allocation7], 1
    %s2722 = scalar_lea.sflag [#allocation7], 1
    %2723 = vsyncpa %s2722, 1
    %2724 = vsyncpa [#allocation5], 1
    %s2725 = scalar_lea.sflag [#allocation5], 1
    %2726 = vsyncpa %s2725, 1

</llo_original>
